<compile_context>
chip_gen: v7x
topology: tpu7x:2x2x1
jax: 0.10.0
libtpu: 0.0.40
codegen_flags: <defaults>
</compile_context>

<pallas_src>
import functools

import jax
import jax.numpy as jnp
from jax.experimental import pallas as pl
from jax.experimental.pallas import tpu as pltpu


_NEG_SLOPE = 0.01      # nn.LeakyReLU() default used inside BasicFullyConnectedNet
_TB_MAX = 512          # swept batch-tile target (kernel is per-step-overhead bound)


def _round_up(x, m):
    return ((x + m - 1) // m) * m


def _pick_batch_tile(B):
    """Pick (tb, Bp): batch tile and padded batch size.

    Prefers tiles that divide the (8-rounded) batch so no jnp.pad copy is
    materialized, and -- when the batch is big enough -- at least two grid
    steps so the "parallel" grid axis can shard across v7x's two TensorCores.
    Small batches (e.g. B=8) run as a single step with at most 7 pad rows.
    """
    Bp8 = _round_up(B, 8)
    if Bp8 <= _TB_MAX:
        if Bp8 >= 256 and Bp8 % 16 == 0:
            return Bp8 // 2, Bp8          # 2 grid steps -> both v7x TCs busy
        return Bp8, Bp8                   # single step
    best = None                           # (pad_rows, -tb, tb, Bp)
    for cand in range(_TB_MAX, 127, -8):
        Bp = _round_up(B, cand)
        key = (Bp - B, -cand)
        if best is None or key < best[:2]:
            best = (Bp - B, -cand, cand, Bp)
    return best[2], best[3]


def _leaky_relu(h, neg_slope):
    return jnp.where(h >= 0.0, h, neg_slope * h)


def _fused_st_mlp(x_bf, xc_bf, p, n_linear, neg_slope, c_half):
    """Fused s/t BasicFullyConnectedNet pair applied to concat(x, xc).

    Both nets of a coupling step share wider matmuls:
      * layer 0 weights are concatenated along the output dim ([s | t]) and
        split by input (x-part vs xc-part) so there is no lane-dim concat of
        activations;
      * layers 1.. use block-diagonal diag(W_s, W_t) weights so the two
        hidden states ride in one [h_s | h_t] activation;
      * the split happens only at the very end (tanh for s, identity for t).

    p = [W0x, W0c, b0, W1, b1, ..., W_{L-1}, b_{L-1}]
        (weights bf16, biases f32 shaped (1, N)).
    Returns (s, t) with tanh already applied to s.
    """
    h = jnp.dot(x_bf, p[0][...], preferred_element_type=jnp.float32)
    h = h + jnp.dot(xc_bf, p[1][...], preferred_element_type=jnp.float32)
    h = h + p[2][...]
    h = _leaky_relu(h, neg_slope)
    idx = 3
    for layer in range(1, n_linear):
        w, b = p[idx], p[idx + 1]
        idx += 2
        h = jnp.dot(h.astype(jnp.bfloat16), w[...],
                    preferred_element_type=jnp.float32) + b[...]
        if layer < n_linear - 1:
            h = _leaky_relu(h, neg_slope)
    s = jnp.tanh(h[:, :c_half])
    t = h[:, c_half:]
    return s, t


# ------------------------------ Pallas kernels -------------------------------
def _dvc_forward_kernel(n_linear, neg_slope, c_half, x_ref, xc_ref, *rest):
    npp = 2 * n_linear + 1                 # packed params per coupling step
    p0 = rest[:npp]
    p1 = rest[npp:2 * npp]
    out_ref, logdet_ref = rest[2 * npp:]

    x = x_ref[...]                         # (tb, C) f32, merged input slab
    xa = x[:, :c_half]
    xb = x[:, c_half:]
    xc_bf = xc_ref[...]                    # (tb, Cc) bf16 (pre-cast in wrapper)

    # coupling step 0: transform second half conditioned on the first half
    s, t = _fused_st_mlp(xa.astype(jnp.bfloat16), xc_bf, p0,
                         n_linear, neg_slope, c_half)
    xb_new = xb * jnp.exp(s) + t
    logdet = jnp.sum(s, axis=-1, keepdims=True)

    # coupling step 1: halves swapped -> transform the original first half
    s, t = _fused_st_mlp(xb_new.astype(jnp.bfloat16), xc_bf, p1,
                         n_linear, neg_slope, c_half)
    xa_new = xa * jnp.exp(s) + t
    logdet = logdet + jnp.sum(s, axis=-1, keepdims=True)

    # single lane-dense output slab in the final (post-swap) layout
    out_ref[...] = jnp.concatenate([xb_new, xa_new], axis=-1).astype(out_ref.dtype)
    logdet_ref[...] = logdet.astype(logdet_ref.dtype)


def _dvc_reverse_kernel(n_linear, neg_slope, c_half, x_ref, xc_ref, *rest):
    npp = 2 * n_linear + 1
    p0 = rest[:npp]
    p1 = rest[npp:2 * npp]
    out_ref = rest[2 * npp]

    x = x_ref[...]
    u = x[:, :c_half]                      # forward output first half
    v = x[:, c_half:]                      # forward output second half
    xc_bf = xc_ref[...]

    # undo coupling step 1
    s, t = _fused_st_mlp(u.astype(jnp.bfloat16), xc_bf, p1,
                         n_linear, neg_slope, c_half)
    v1 = (v - t) * jnp.exp(-s)

    # undo coupling step 0 (halves were swapped between the two steps)
    s, t = _fused_st_mlp(v1.astype(jnp.bfloat16), xc_bf, p0,
                         n_linear, neg_slope, c_half)
    u0 = (u - t) * jnp.exp(-s)

    out_ref[...] = jnp.concatenate([v1, u0], axis=-1).astype(out_ref.dtype)


# --------------------------------- wrapper ------------------------------------
@functools.partial(jax.jit, static_argnames=("n_linear", "reverse"))
def _coupling_call(x2, xc, params, *, n_linear, reverse=False):
    B, C = x2.shape
    Cc = xc.shape[1]
    c_half = C // 2

    # xc is only ever an MXU operand -> ship it as bf16 (half the DMA bytes,
    # no per-tile VPU cast inside the kernel).
    xc = xc.astype(jnp.bfloat16)

    tb, Bp = _pick_batch_tile(B)
    pad = Bp - B
    if pad:
        x2 = jnp.pad(x2, ((0, pad), (0, 0)))
        xc = jnp.pad(xc, ((0, pad), (0, 0)))
    grid = (Bp // tb,)

    def row_spec(cols):
        return pl.BlockSpec((tb, cols), lambda i: (i, 0))

    # Weights stay fully VMEM-resident (constant index_map).
    # NOTE (v7x, 64 MiB physical VMEM): at very large hidden_dim the resident,
    # pipeline-double-buffered weights should be single-buffered or given a
    # hidden-dim grid axis; at these sizes the computed limit below stays far
    # under budget on every generation (v5e's default scoped VMEM is 16 MiB,
    # hence the explicit override).
    in_specs = [row_spec(C), row_spec(Cc)]
    in_specs += [pl.BlockSpec(p.shape, lambda i: (0, 0)) for p in params]

    param_bytes = sum(int(p.size) * p.dtype.itemsize for p in params)
    tile_bytes = tb * (C * 4 + Cc * 2 + C * 4 + 4)
    vmem_limit = int(min(2 * (param_bytes + tile_bytes) + (32 << 20), 60 << 20))

    compiler_params = pltpu.CompilerParams(
        dimension_semantics=("parallel",),
        vmem_limit_bytes=vmem_limit,
    )

    if reverse:
        kernel = functools.partial(_dvc_reverse_kernel, n_linear, _NEG_SLOPE, c_half)
        out = pl.pallas_call(
            kernel,
            out_shape=jax.ShapeDtypeStruct((Bp, C), jnp.float32),
            grid_spec=pltpu.PrefetchScalarGridSpec(
                num_scalar_prefetch=0,
                grid=grid,
                in_specs=in_specs,
                out_specs=row_spec(C),
            ),
            compiler_params=compiler_params,
        )(x2, xc, *params)
        return out[:B]

    kernel = functools.partial(_dvc_forward_kernel, n_linear, _NEG_SLOPE, c_half)
    out, logdet = pl.pallas_call(
        kernel,
        out_shape=(jax.ShapeDtypeStruct((Bp, C), jnp.float32),
                   jax.ShapeDtypeStruct((Bp, 1), jnp.float32)),
        grid_spec=pltpu.PrefetchScalarGridSpec(
            num_scalar_prefetch=0,
            grid=grid,
            in_specs=in_specs,
            out_specs=[row_spec(C), pl.BlockSpec((tb, 1), lambda i: (i, 0))],
        ),
        compiler_params=compiler_params,
    )(x2, xc, *params)
    return out[:B], logdet[:B, 0]


class ConditionalDoubleVectorCouplingBlockPallas:
    """JAX/Pallas equivalent of perturbnet ConditionalDoubleVectorCouplingBlock."""

    def __init__(self, in_channels, cond_channels, hidden_dim, depth=2, key=None):
        assert in_channels % 2 == 0
        self.in_channels = in_channels
        self.cond_channels = cond_channels
        self.hidden_dim = hidden_dim
        self.depth = depth
        self.n_linear = depth + 2          # Linear layers per BasicFullyConnectedNet

        half = in_channels // 2
        in_dim = half + cond_channels
        key = jax.random.PRNGKey(0) if key is None else key

        def make_net(k):
            dims = [in_dim] + [hidden_dim] * (depth + 1) + [half]
            n_lin = len(dims) - 1
            ks = jax.random.split(k, 2 * n_lin)
            layers = []
            for li in range(n_lin):
                fan_in, fan_out = dims[li], dims[li + 1]
                bound = 1.0 / float(fan_in) ** 0.5
                w = jax.random.uniform(ks[2 * li], (fan_in, fan_out),
                                       jnp.float32, -bound, bound)
                b = jax.random.uniform(ks[2 * li + 1], (fan_out,),
                                       jnp.float32, -bound, bound)
                # bf16-representable f32 master so the kernel (bf16 matmuls)
                # and the f32 reference share identical weights
                w = w.astype(jnp.bfloat16).astype(jnp.float32)
                layers.append((w, b))
            return layers

        ks = jax.random.split(key, 4)
        s0, t0, s1, t1 = (make_net(k) for k in ks)
        self.ref_s = [s0, s1]
        self.ref_t = [t0, t1]

        def pack_step(s_layers, t_layers):
            """Pack one coupling step's s/t net pair for the fused kernel."""
            flat = []
            (ws0, bs0), (wt0, bt0) = s_layers[0], t_layers[0]
            w0 = jnp.concatenate([ws0, wt0], axis=1)              # (half+Cc, 2H)
            flat += [w0[:half].astype(jnp.bfloat16),               # x  part
                     w0[half:].astype(jnp.bfloat16),               # xc part
                     jnp.concatenate([bs0, bt0]).reshape(1, -1)]
            for (ws, bs), (wt, bt) in zip(s_layers[1:], t_layers[1:]):
                ki, ko = ws.shape
                w = jnp.zeros((2 * ki, 2 * ko), jnp.float32)
                w = w.at[:ki, :ko].set(ws).at[ki:, ko:].set(wt)    # diag(Ws, Wt)
                flat += [w.astype(jnp.bfloat16),
                         jnp.concatenate([bs, bt]).reshape(1, -1)]
            return flat

        # kernel expects the coupling steps in order: step0 (s0,t0), step1 (s1,t1)
        self.kernel_params = tuple(pack_step(s0, t0) + pack_step(s1, t1))

    def __call__(self, x, xc, reverse=False):
        assert x.ndim == 4 and xc.ndim == 4
        x2 = jnp.squeeze(x, axis=(2, 3))
        xc2 = jnp.squeeze(xc, axis=(2, 3))
        if not reverse:
            out, logdet = _coupling_call(x2, xc2, self.kernel_params,
                                         n_linear=self.n_linear, reverse=False)
            return out[:, :, None, None], logdet
        out = _coupling_call(x2, xc2, self.kernel_params,
                             n_linear=self.n_linear, reverse=True)
        return out[:, :, None, None]


# ------------------------------ pure-JAX reference ----------------------------
def _reference_forward(block, x, xc):
    """f32 mirror of the PyTorch forward (reverse=False)."""
    x2 = jnp.squeeze(x, axis=(2, 3))
    xc2 = jnp.squeeze(xc, axis=(2, 3))

    def net(h, layers, use_tanh):
        n = len(layers)
        for li, (w, b) in enumerate(layers):
            h = jnp.dot(h, w, precision=jax.lax.Precision.HIGHEST) + b
            if li < n - 1:
                h = jnp.where(h >= 0.0, h, _NEG_SLOPE * h)
        return jnp.tanh(h) if use_tanh else h

    logdet = jnp.zeros((x2.shape[0],), jnp.float32)
    cur = x2
    for i in range(2):
        half = cur.shape[1] // 2
        if i % 2 != 0:
            cur = jnp.concatenate([cur[:, half:], cur[:, :half]], axis=1)
        xa, xb = cur[:, :half], cur[:, half:]
        cond = jnp.concatenate([xa, xc2], axis=1)
        scale = net(cond, block.ref_s[i], True)
        shift = net(cond, block.ref_t[i], False)
        xb = xb * jnp.exp(scale) + shift
        cur = jnp.concatenate([xa, xb], axis=1)
        logdet = logdet + jnp.sum(scale, axis=1)
    return cur[:, :, None, None], logdet


# ------------------------------------ main ------------------------------------
if __name__ == "__main__":
    key = jax.random.PRNGKey(0)
    k_x, k_c, k_p = jax.random.split(key, 3)

    in_channels, cond_channels, hidden_dim, depth = 32, 8, 32, 2
    B = 8

    block = ConditionalDoubleVectorCouplingBlockPallas(
        in_channels, cond_channels, hidden_dim, depth=depth, key=k_p)

    x = jax.random.normal(k_x, (B, in_channels, 1, 1), dtype=jnp.float32)
    xc = jax.random.normal(k_c, (B, cond_channels, 1, 1), dtype=jnp.float32)

    out, logdet = block(x, xc)
    out = jax.block_until_ready(out)
    logdet = jax.block_until_ready(logdet)

    ref_out, ref_logdet = _reference_forward(block, x, xc)

    assert out.shape == (B, in_channels, 1, 1), out.shape
    assert logdet.shape == (B,), logdet.shape
    # bf16 matmul inputs with f32 accumulation -> loose-ish tolerance vs f32 ref
    assert jnp.allclose(out, ref_out, rtol=2e-2, atol=2e-2), float(
        jnp.max(jnp.abs(out - ref_out)))
    assert jnp.allclose(logdet, ref_logdet, rtol=2e-2, atol=2e-2), float(
        jnp.max(jnp.abs(logdet - ref_logdet)))

    # invertibility: reverse(forward(x)) ~= x
    x_rec = block(out, xc, reverse=True)
    x_rec = jax.block_until_ready(x_rec)
    assert jnp.allclose(x_rec, x, rtol=5e-2, atol=5e-2), float(
        jnp.max(jnp.abs(x_rec - x)))

    # TODO(synk): training-time pieces (parameter learning / optimizer state)
    # are out of scope; this implements the eval forward and inverse passes.
    print("KERNEL_OK")
</pallas_src>

<mosaic_0001>
module attributes {stable_mosaic.version = 11 : i64} {
  func.func @_dvc_forward_kernel(%arg0: i32, %arg1: memref<8x32xf32, #tpu.memory_space<vmem>>, %arg2: memref<8x8xbf16, #tpu.memory_space<vmem>>, %arg3: memref<16x64xbf16, #tpu.memory_space<vmem>>, %arg4: memref<8x64xbf16, #tpu.memory_space<vmem>>, %arg5: memref<1x64xf32, #tpu.memory_space<vmem>>, %arg6: memref<64x64xbf16, #tpu.memory_space<vmem>>, %arg7: memref<1x64xf32, #tpu.memory_space<vmem>>, %arg8: memref<64x64xbf16, #tpu.memory_space<vmem>>, %arg9: memref<1x64xf32, #tpu.memory_space<vmem>>, %arg10: memref<64x32xbf16, #tpu.memory_space<vmem>>, %arg11: memref<1x32xf32, #tpu.memory_space<vmem>>, %arg12: memref<16x64xbf16, #tpu.memory_space<vmem>>, %arg13: memref<8x64xbf16, #tpu.memory_space<vmem>>, %arg14: memref<1x64xf32, #tpu.memory_space<vmem>>, %arg15: memref<64x64xbf16, #tpu.memory_space<vmem>>, %arg16: memref<1x64xf32, #tpu.memory_space<vmem>>, %arg17: memref<64x64xbf16, #tpu.memory_space<vmem>>, %arg18: memref<1x64xf32, #tpu.memory_space<vmem>>, %arg19: memref<64x32xbf16, #tpu.memory_space<vmem>>, %arg20: memref<1x32xf32, #tpu.memory_space<vmem>>, %arg21: memref<8x32xf32, #tpu.memory_space<vmem>>, %arg22: memref<8x1xf32, #tpu.memory_space<vmem>>) attributes {dimension_semantics = [#tpu.dimension_semantics<parallel>], iteration_bounds = array<i64: 1>, scalar_prefetch = 0 : i64, scratch_operands = 0 : i64, tpu.core_type = #tpu.core_type<tc>, window_params = [{transform_indices = @transform_0, window_bounds = array<i64: 8, 32>}, {transform_indices = @transform_1, window_bounds = array<i64: 8, 8>}, {pipeline_mode = #tpu.pipeline_mode<synchronous>, transform_indices = @transform_2, window_bounds = array<i64: 16, 64>}, {pipeline_mode = #tpu.pipeline_mode<synchronous>, transform_indices = @transform_3, window_bounds = array<i64: 8, 64>}, {pipeline_mode = #tpu.pipeline_mode<synchronous>, transform_indices = @transform_4, window_bounds = array<i64: 1, 64>}, {pipeline_mode = #tpu.pipeline_mode<synchronous>, transform_indices = @transform_5, window_bounds = array<i64: 64, 64>}, {pipeline_mode = #tpu.pipeline_mode<synchronous>, transform_indices = @transform_6, window_bounds = array<i64: 1, 64>}, {pipeline_mode = #tpu.pipeline_mode<synchronous>, transform_indices = @transform_7, window_bounds = array<i64: 64, 64>}, {pipeline_mode = #tpu.pipeline_mode<synchronous>, transform_indices = @transform_8, window_bounds = array<i64: 1, 64>}, {pipeline_mode = #tpu.pipeline_mode<synchronous>, transform_indices = @transform_9, window_bounds = array<i64: 64, 32>}, {pipeline_mode = #tpu.pipeline_mode<synchronous>, transform_indices = @transform_10, window_bounds = array<i64: 1, 32>}, {pipeline_mode = #tpu.pipeline_mode<synchronous>, transform_indices = @transform_11, window_bounds = array<i64: 16, 64>}, {pipeline_mode = #tpu.pipeline_mode<synchronous>, transform_indices = @transform_12, window_bounds = array<i64: 8, 64>}, {pipeline_mode = #tpu.pipeline_mode<synchronous>, transform_indices = @transform_13, window_bounds = array<i64: 1, 64>}, {pipeline_mode = #tpu.pipeline_mode<synchronous>, transform_indices = @transform_14, window_bounds = array<i64: 64, 64>}, {pipeline_mode = #tpu.pipeline_mode<synchronous>, transform_indices = @transform_15, window_bounds = array<i64: 1, 64>}, {pipeline_mode = #tpu.pipeline_mode<synchronous>, transform_indices = @transform_16, window_bounds = array<i64: 64, 64>}, {pipeline_mode = #tpu.pipeline_mode<synchronous>, transform_indices = @transform_17, window_bounds = array<i64: 1, 64>}, {pipeline_mode = #tpu.pipeline_mode<synchronous>, transform_indices = @transform_18, window_bounds = array<i64: 64, 32>}, {pipeline_mode = #tpu.pipeline_mode<synchronous>, transform_indices = @transform_19, window_bounds = array<i64: 1, 32>}, {transform_indices = @transform_20, window_bounds = array<i64: 8, 32>}, {transform_indices = @transform_21, window_bounds = array<i64: 8, 1>}]} {
    %c0 = arith.constant 0 : index
    %c0_0 = arith.constant 0 : index
    %0 = vector.load %arg1[%c0, %c0_0] : memref<8x32xf32, #tpu.memory_space<vmem>>, vector<8x32xf32>
    %1 = vector.extract_strided_slice %0 {offsets = [0, 0], sizes = [8, 16], strides = [1, 1]} : vector<8x32xf32> to vector<8x16xf32>
    %2 = vector.extract_strided_slice %0 {offsets = [0, 16], sizes = [8, 16], strides = [1, 1]} : vector<8x32xf32> to vector<8x16xf32>
    %c0_1 = arith.constant 0 : index
    %c0_2 = arith.constant 0 : index
    %3 = vector.load %arg2[%c0_1, %c0_2] : memref<8x8xbf16, #tpu.memory_space<vmem>>, vector<8x8xbf16>
    %4 = arith.truncf %1 : vector<8x16xf32> to vector<8x16xbf16>
    %c0_3 = arith.constant 0 : index
    %c0_4 = arith.constant 0 : index
    %5 = vector.load %arg3[%c0_3, %c0_4] : memref<16x64xbf16, #tpu.memory_space<vmem>>, vector<16x64xbf16>
    %cst = arith.constant dense<0.000000e+00> : vector<8x64xf32>
    %6 = tpu.matmul %4, %5, %cst {dimension_numbers = #tpu.dot_dimension_numbers<[1], [0], [0], [1], [0, 0, 1, 1], [], []>} : vector<8x16xbf16>, vector<16x64xbf16>, vector<8x64xf32> -> vector<8x64xf32>
    %c0_5 = arith.constant 0 : index
    %c0_6 = arith.constant 0 : index
    %7 = vector.load %arg4[%c0_5, %c0_6] : memref<8x64xbf16, #tpu.memory_space<vmem>>, vector<8x64xbf16>
    %cst_7 = arith.constant dense<0.000000e+00> : vector<8x64xf32>
    %8 = tpu.matmul %3, %7, %cst_7 {dimension_numbers = #tpu.dot_dimension_numbers<[1], [0], [0], [1], [0, 0, 1, 1], [], []>} : vector<8x8xbf16>, vector<8x64xbf16>, vector<8x64xf32> -> vector<8x64xf32>
    %9 = arith.addf %6, %8 : vector<8x64xf32>
    %c0_8 = arith.constant 0 : index
    %c0_9 = arith.constant 0 : index
    %10 = vector.load %arg5[%c0_8, %c0_9] : memref<1x64xf32, #tpu.memory_space<vmem>>, vector<1x64xf32>
    %11 = vector.broadcast %10 : vector<1x64xf32> to vector<8x64xf32>
    %12 = arith.addf %9, %11 : vector<8x64xf32>
    %cst_10 = arith.constant 0.000000e+00 : f32
    %13 = vector.broadcast %cst_10 : f32 to vector<8x64xf32>
    %14 = arith.cmpf oge, %12, %13 : vector<8x64xf32>
    %cst_11 = arith.constant 0.00999999977 : f32
    %15 = vector.broadcast %cst_11 : f32 to vector<8x64xf32>
    %16 = arith.mulf %15, %12 : vector<8x64xf32>
    %17 = arith.select %14, %12, %16 : vector<8x64xi1>, vector<8x64xf32>
    %18 = arith.truncf %17 : vector<8x64xf32> to vector<8x64xbf16>
    %c0_12 = arith.constant 0 : index
    %c0_13 = arith.constant 0 : index
    %19 = vector.load %arg6[%c0_12, %c0_13] : memref<64x64xbf16, #tpu.memory_space<vmem>>, vector<64x64xbf16>
    %cst_14 = arith.constant dense<0.000000e+00> : vector<8x64xf32>
    %20 = tpu.matmul %18, %19, %cst_14 {dimension_numbers = #tpu.dot_dimension_numbers<[1], [0], [0], [1], [0, 0, 1, 1], [], []>} : vector<8x64xbf16>, vector<64x64xbf16>, vector<8x64xf32> -> vector<8x64xf32>
    %c0_15 = arith.constant 0 : index
    %c0_16 = arith.constant 0 : index
    %21 = vector.load %arg7[%c0_15, %c0_16] : memref<1x64xf32, #tpu.memory_space<vmem>>, vector<1x64xf32>
    %22 = vector.broadcast %21 : vector<1x64xf32> to vector<8x64xf32>
    %23 = arith.addf %20, %22 : vector<8x64xf32>
    %cst_17 = arith.constant 0.000000e+00 : f32
    %24 = vector.broadcast %cst_17 : f32 to vector<8x64xf32>
    %25 = arith.cmpf oge, %23, %24 : vector<8x64xf32>
    %cst_18 = arith.constant 0.00999999977 : f32
    %26 = vector.broadcast %cst_18 : f32 to vector<8x64xf32>
    %27 = arith.mulf %26, %23 : vector<8x64xf32>
    %28 = arith.select %25, %23, %27 : vector<8x64xi1>, vector<8x64xf32>
    %29 = arith.truncf %28 : vector<8x64xf32> to vector<8x64xbf16>
    %c0_19 = arith.constant 0 : index
    %c0_20 = arith.constant 0 : index
    %30 = vector.load %arg8[%c0_19, %c0_20] : memref<64x64xbf16, #tpu.memory_space<vmem>>, vector<64x64xbf16>
    %cst_21 = arith.constant dense<0.000000e+00> : vector<8x64xf32>
    %31 = tpu.matmul %29, %30, %cst_21 {dimension_numbers = #tpu.dot_dimension_numbers<[1], [0], [0], [1], [0, 0, 1, 1], [], []>} : vector<8x64xbf16>, vector<64x64xbf16>, vector<8x64xf32> -> vector<8x64xf32>
    %c0_22 = arith.constant 0 : index
    %c0_23 = arith.constant 0 : index
    %32 = vector.load %arg9[%c0_22, %c0_23] : memref<1x64xf32, #tpu.memory_space<vmem>>, vector<1x64xf32>
    %33 = vector.broadcast %32 : vector<1x64xf32> to vector<8x64xf32>
    %34 = arith.addf %31, %33 : vector<8x64xf32>
    %cst_24 = arith.constant 0.000000e+00 : f32
    %35 = vector.broadcast %cst_24 : f32 to vector<8x64xf32>
    %36 = arith.cmpf oge, %34, %35 : vector<8x64xf32>
    %cst_25 = arith.constant 0.00999999977 : f32
    %37 = vector.broadcast %cst_25 : f32 to vector<8x64xf32>
    %38 = arith.mulf %37, %34 : vector<8x64xf32>
    %39 = arith.select %36, %34, %38 : vector<8x64xi1>, vector<8x64xf32>
    %40 = arith.truncf %39 : vector<8x64xf32> to vector<8x64xbf16>
    %c0_26 = arith.constant 0 : index
    %c0_27 = arith.constant 0 : index
    %41 = vector.load %arg10[%c0_26, %c0_27] : memref<64x32xbf16, #tpu.memory_space<vmem>>, vector<64x32xbf16>
    %cst_28 = arith.constant dense<0.000000e+00> : vector<8x32xf32>
    %42 = tpu.matmul %40, %41, %cst_28 {dimension_numbers = #tpu.dot_dimension_numbers<[1], [0], [0], [1], [0, 0, 1, 1], [], []>} : vector<8x64xbf16>, vector<64x32xbf16>, vector<8x32xf32> -> vector<8x32xf32>
    %c0_29 = arith.constant 0 : index
    %c0_30 = arith.constant 0 : index
    %43 = vector.load %arg11[%c0_29, %c0_30] : memref<1x32xf32, #tpu.memory_space<vmem>>, vector<1x32xf32>
    %44 = vector.broadcast %43 : vector<1x32xf32> to vector<8x32xf32>
    %45 = arith.addf %42, %44 : vector<8x32xf32>
    %46 = vector.extract_strided_slice %45 {offsets = [0, 0], sizes = [8, 16], strides = [1, 1]} : vector<8x32xf32> to vector<8x16xf32>
    %47 = math.tanh %46 : vector<8x16xf32>
    %48 = vector.extract_strided_slice %45 {offsets = [0, 16], sizes = [8, 16], strides = [1, 1]} : vector<8x32xf32> to vector<8x16xf32>
    %49 = math.exp %47 : vector<8x16xf32>
    %50 = arith.mulf %2, %49 : vector<8x16xf32>
    %51 = arith.addf %50, %48 : vector<8x16xf32>
    %cst_31 = arith.constant dense<0.000000e+00> : vector<8xf32>
    %52 = vector.multi_reduction <add>, %47, %cst_31 [1] : vector<8x16xf32> to vector<8xf32>
    %53 = vector.shape_cast %52 : vector<8xf32> to vector<8x1xf32>
    %54 = arith.truncf %51 : vector<8x16xf32> to vector<8x16xbf16>
    %c0_32 = arith.constant 0 : index
    %c0_33 = arith.constant 0 : index
    %55 = vector.load %arg12[%c0_32, %c0_33] : memref<16x64xbf16, #tpu.memory_space<vmem>>, vector<16x64xbf16>
    %cst_34 = arith.constant dense<0.000000e+00> : vector<8x64xf32>
    %56 = tpu.matmul %54, %55, %cst_34 {dimension_numbers = #tpu.dot_dimension_numbers<[1], [0], [0], [1], [0, 0, 1, 1], [], []>} : vector<8x16xbf16>, vector<16x64xbf16>, vector<8x64xf32> -> vector<8x64xf32>
    %c0_35 = arith.constant 0 : index
    %c0_36 = arith.constant 0 : index
    %57 = vector.load %arg13[%c0_35, %c0_36] : memref<8x64xbf16, #tpu.memory_space<vmem>>, vector<8x64xbf16>
    %cst_37 = arith.constant dense<0.000000e+00> : vector<8x64xf32>
    %58 = tpu.matmul %3, %57, %cst_37 {dimension_numbers = #tpu.dot_dimension_numbers<[1], [0], [0], [1], [0, 0, 1, 1], [], []>} : vector<8x8xbf16>, vector<8x64xbf16>, vector<8x64xf32> -> vector<8x64xf32>
    %59 = arith.addf %56, %58 : vector<8x64xf32>
    %c0_38 = arith.constant 0 : index
    %c0_39 = arith.constant 0 : index
    %60 = vector.load %arg14[%c0_38, %c0_39] : memref<1x64xf32, #tpu.memory_space<vmem>>, vector<1x64xf32>
    %61 = vector.broadcast %60 : vector<1x64xf32> to vector<8x64xf32>
    %62 = arith.addf %59, %61 : vector<8x64xf32>
    %cst_40 = arith.constant 0.000000e+00 : f32
    %63 = vector.broadcast %cst_40 : f32 to vector<8x64xf32>
    %64 = arith.cmpf oge, %62, %63 : vector<8x64xf32>
    %cst_41 = arith.constant 0.00999999977 : f32
    %65 = vector.broadcast %cst_41 : f32 to vector<8x64xf32>
    %66 = arith.mulf %65, %62 : vector<8x64xf32>
    %67 = arith.select %64, %62, %66 : vector<8x64xi1>, vector<8x64xf32>
    %68 = arith.truncf %67 : vector<8x64xf32> to vector<8x64xbf16>
    %c0_42 = arith.constant 0 : index
    %c0_43 = arith.constant 0 : index
    %69 = vector.load %arg15[%c0_42, %c0_43] : memref<64x64xbf16, #tpu.memory_space<vmem>>, vector<64x64xbf16>
    %cst_44 = arith.constant dense<0.000000e+00> : vector<8x64xf32>
    %70 = tpu.matmul %68, %69, %cst_44 {dimension_numbers = #tpu.dot_dimension_numbers<[1], [0], [0], [1], [0, 0, 1, 1], [], []>} : vector<8x64xbf16>, vector<64x64xbf16>, vector<8x64xf32> -> vector<8x64xf32>
    %c0_45 = arith.constant 0 : index
    %c0_46 = arith.constant 0 : index
    %71 = vector.load %arg16[%c0_45, %c0_46] : memref<1x64xf32, #tpu.memory_space<vmem>>, vector<1x64xf32>
    %72 = vector.broadcast %71 : vector<1x64xf32> to vector<8x64xf32>
    %73 = arith.addf %70, %72 : vector<8x64xf32>
    %cst_47 = arith.constant 0.000000e+00 : f32
    %74 = vector.broadcast %cst_47 : f32 to vector<8x64xf32>
    %75 = arith.cmpf oge, %73, %74 : vector<8x64xf32>
    %cst_48 = arith.constant 0.00999999977 : f32
    %76 = vector.broadcast %cst_48 : f32 to vector<8x64xf32>
    %77 = arith.mulf %76, %73 : vector<8x64xf32>
    %78 = arith.select %75, %73, %77 : vector<8x64xi1>, vector<8x64xf32>
    %79 = arith.truncf %78 : vector<8x64xf32> to vector<8x64xbf16>
    %c0_49 = arith.constant 0 : index
    %c0_50 = arith.constant 0 : index
    %80 = vector.load %arg17[%c0_49, %c0_50] : memref<64x64xbf16, #tpu.memory_space<vmem>>, vector<64x64xbf16>
    %cst_51 = arith.constant dense<0.000000e+00> : vector<8x64xf32>
    %81 = tpu.matmul %79, %80, %cst_51 {dimension_numbers = #tpu.dot_dimension_numbers<[1], [0], [0], [1], [0, 0, 1, 1], [], []>} : vector<8x64xbf16>, vector<64x64xbf16>, vector<8x64xf32> -> vector<8x64xf32>
    %c0_52 = arith.constant 0 : index
    %c0_53 = arith.constant 0 : index
    %82 = vector.load %arg18[%c0_52, %c0_53] : memref<1x64xf32, #tpu.memory_space<vmem>>, vector<1x64xf32>
    %83 = vector.broadcast %82 : vector<1x64xf32> to vector<8x64xf32>
    %84 = arith.addf %81, %83 : vector<8x64xf32>
    %cst_54 = arith.constant 0.000000e+00 : f32
    %85 = vector.broadcast %cst_54 : f32 to vector<8x64xf32>
    %86 = arith.cmpf oge, %84, %85 : vector<8x64xf32>
    %cst_55 = arith.constant 0.00999999977 : f32
    %87 = vector.broadcast %cst_55 : f32 to vector<8x64xf32>
    %88 = arith.mulf %87, %84 : vector<8x64xf32>
    %89 = arith.select %86, %84, %88 : vector<8x64xi1>, vector<8x64xf32>
    %90 = arith.truncf %89 : vector<8x64xf32> to vector<8x64xbf16>
    %c0_56 = arith.constant 0 : index
    %c0_57 = arith.constant 0 : index
    %91 = vector.load %arg19[%c0_56, %c0_57] : memref<64x32xbf16, #tpu.memory_space<vmem>>, vector<64x32xbf16>
    %cst_58 = arith.constant dense<0.000000e+00> : vector<8x32xf32>
    %92 = tpu.matmul %90, %91, %cst_58 {dimension_numbers = #tpu.dot_dimension_numbers<[1], [0], [0], [1], [0, 0, 1, 1], [], []>} : vector<8x64xbf16>, vector<64x32xbf16>, vector<8x32xf32> -> vector<8x32xf32>
    %c0_59 = arith.constant 0 : index
    %c0_60 = arith.constant 0 : index
    %93 = vector.load %arg20[%c0_59, %c0_60] : memref<1x32xf32, #tpu.memory_space<vmem>>, vector<1x32xf32>
    %94 = vector.broadcast %93 : vector<1x32xf32> to vector<8x32xf32>
    %95 = arith.addf %92, %94 : vector<8x32xf32>
    %96 = vector.extract_strided_slice %95 {offsets = [0, 0], sizes = [8, 16], strides = [1, 1]} : vector<8x32xf32> to vector<8x16xf32>
    %97 = math.tanh %96 : vector<8x16xf32>
    %98 = vector.extract_strided_slice %95 {offsets = [0, 16], sizes = [8, 16], strides = [1, 1]} : vector<8x32xf32> to vector<8x16xf32>
    %99 = math.exp %97 : vector<8x16xf32>
    %100 = arith.mulf %1, %99 : vector<8x16xf32>
    %101 = arith.addf %100, %98 : vector<8x16xf32>
    %cst_61 = arith.constant dense<0.000000e+00> : vector<8xf32>
    %102 = vector.multi_reduction <add>, %97, %cst_61 [1] : vector<8x16xf32> to vector<8xf32>
    %103 = vector.shape_cast %102 : vector<8xf32> to vector<8x1xf32>
    %104 = arith.addf %53, %103 : vector<8x1xf32>
    %105 = tpu.concatenate %51, %101 in 1 : vector<8x16xf32>, vector<8x16xf32> -> vector<8x32xf32>
    %c0_62 = arith.constant 0 : index
    %c0_63 = arith.constant 0 : index
    %106 = vector.load %arg21[%c0_62, %c0_63] : memref<8x32xf32, #tpu.memory_space<vmem>>, vector<8x32xf32>
    tpu.vector_store %arg21[%c0_62, %c0_63], %105 {strides = array<i32>} : memref<8x32xf32, #tpu.memory_space<vmem>>, vector<8x32xf32>,
    %c0_64 = arith.constant 0 : index
    %c0_65 = arith.constant 0 : index
    %107 = vector.load %arg22[%c0_64, %c0_65] : memref<8x1xf32, #tpu.memory_space<vmem>>, vector<8x1xf32>
    tpu.vector_store %arg22[%c0_64, %c0_65], %104 {strides = array<i32>} : memref<8x1xf32, #tpu.memory_space<vmem>>, vector<8x1xf32>,
    return
  }
  func.func @transform_0(%arg0: i32) -> (i32, i32) {
    %c0_i32 = arith.constant 0 : i32
    %c0_i32_0 = arith.constant 0 : i32
    return %arg0, %c0_i32 : i32, i32
  }
  func.func @transform_1(%arg0: i32) -> (i32, i32) {
    %c0_i32 = arith.constant 0 : i32
    %c0_i32_0 = arith.constant 0 : i32
    return %arg0, %c0_i32 : i32, i32
  }
  func.func @transform_2(%arg0: i32) -> (i32, i32) {
    %c0_i32 = arith.constant 0 : i32
    %c0_i32_0 = arith.constant 0 : i32
    %c0_i32_1 = arith.constant 0 : i32
    return %c0_i32, %c0_i32_0 : i32, i32
  }
  func.func @transform_3(%arg0: i32) -> (i32, i32) {
    %c0_i32 = arith.constant 0 : i32
    %c0_i32_0 = arith.constant 0 : i32
    %c0_i32_1 = arith.constant 0 : i32
    return %c0_i32, %c0_i32_0 : i32, i32
  }
  func.func @transform_4(%arg0: i32) -> (i32, i32) {
    %c0_i32 = arith.constant 0 : i32
    %c0_i32_0 = arith.constant 0 : i32
    %c0_i32_1 = arith.constant 0 : i32
    return %c0_i32, %c0_i32_0 : i32, i32
  }
  func.func @transform_5(%arg0: i32) -> (i32, i32) {
    %c0_i32 = arith.constant 0 : i32
    %c0_i32_0 = arith.constant 0 : i32
    %c0_i32_1 = arith.constant 0 : i32
    return %c0_i32, %c0_i32_0 : i32, i32
  }
  func.func @transform_6(%arg0: i32) -> (i32, i32) {
    %c0_i32 = arith.constant 0 : i32
    %c0_i32_0 = arith.constant 0 : i32
    %c0_i32_1 = arith.constant 0 : i32
    return %c0_i32, %c0_i32_0 : i32, i32
  }
  func.func @transform_7(%arg0: i32) -> (i32, i32) {
    %c0_i32 = arith.constant 0 : i32
    %c0_i32_0 = arith.constant 0 : i32
    %c0_i32_1 = arith.constant 0 : i32
    return %c0_i32, %c0_i32_0 : i32, i32
  }
  func.func @transform_8(%arg0: i32) -> (i32, i32) {
    %c0_i32 = arith.constant 0 : i32
    %c0_i32_0 = arith.constant 0 : i32
    %c0_i32_1 = arith.constant 0 : i32
    return %c0_i32, %c0_i32_0 : i32, i32
  }
  func.func @transform_9(%arg0: i32) -> (i32, i32) {
    %c0_i32 = arith.constant 0 : i32
    %c0_i32_0 = arith.constant 0 : i32
    %c0_i32_1 = arith.constant 0 : i32
    return %c0_i32, %c0_i32_0 : i32, i32
  }
  func.func @transform_10(%arg0: i32) -> (i32, i32) {
    %c0_i32 = arith.constant 0 : i32
    %c0_i32_0 = arith.constant 0 : i32
    %c0_i32_1 = arith.constant 0 : i32
    return %c0_i32, %c0_i32_0 : i32, i32
  }
  func.func @transform_11(%arg0: i32) -> (i32, i32) {
    %c0_i32 = arith.constant 0 : i32
    %c0_i32_0 = arith.constant 0 : i32
    %c0_i32_1 = arith.constant 0 : i32
    return %c0_i32, %c0_i32_0 : i32, i32
  }
  func.func @transform_12(%arg0: i32) -> (i32, i32) {
    %c0_i32 = arith.constant 0 : i32
    %c0_i32_0 = arith.constant 0 : i32
    %c0_i32_1 = arith.constant 0 : i32
    return %c0_i32, %c0_i32_0 : i32, i32
  }
  func.func @transform_13(%arg0: i32) -> (i32, i32) {
    %c0_i32 = arith.constant 0 : i32
    %c0_i32_0 = arith.constant 0 : i32
    %c0_i32_1 = arith.constant 0 : i32
    return %c0_i32, %c0_i32_0 : i32, i32
  }
  func.func @transform_14(%arg0: i32) -> (i32, i32) {
    %c0_i32 = arith.constant 0 : i32
    %c0_i32_0 = arith.constant 0 : i32
    %c0_i32_1 = arith.constant 0 : i32
    return %c0_i32, %c0_i32_0 : i32, i32
  }
  func.func @transform_15(%arg0: i32) -> (i32, i32) {
    %c0_i32 = arith.constant 0 : i32
    %c0_i32_0 = arith.constant 0 : i32
    %c0_i32_1 = arith.constant 0 : i32
    return %c0_i32, %c0_i32_0 : i32, i32
  }
  func.func @transform_16(%arg0: i32) -> (i32, i32) {
    %c0_i32 = arith.constant 0 : i32
    %c0_i32_0 = arith.constant 0 : i32
    %c0_i32_1 = arith.constant 0 : i32
    return %c0_i32, %c0_i32_0 : i32, i32
  }
  func.func @transform_17(%arg0: i32) -> (i32, i32) {
    %c0_i32 = arith.constant 0 : i32
    %c0_i32_0 = arith.constant 0 : i32
    %c0_i32_1 = arith.constant 0 : i32
    return %c0_i32, %c0_i32_0 : i32, i32
  }
  func.func @transform_18(%arg0: i32) -> (i32, i32) {
    %c0_i32 = arith.constant 0 : i32
    %c0_i32_0 = arith.constant 0 : i32
    %c0_i32_1 = arith.constant 0 : i32
    return %c0_i32, %c0_i32_0 : i32, i32
  }
  func.func @transform_19(%arg0: i32) -> (i32, i32) {
    %c0_i32 = arith.constant 0 : i32
    %c0_i32_0 = arith.constant 0 : i32
    %c0_i32_1 = arith.constant 0 : i32
    return %c0_i32, %c0_i32_0 : i32, i32
  }
  func.func @transform_20(%arg0: i32) -> (i32, i32) {
    %c0_i32 = arith.constant 0 : i32
    %c0_i32_0 = arith.constant 0 : i32
    return %arg0, %c0_i32 : i32, i32
  }
  func.func @transform_21(%arg0: i32) -> (i32, i32) {
    %c0_i32 = arith.constant 0 : i32
    %c0_i32_0 = arith.constant 0 : i32
    return %arg0, %c0_i32 : i32, i32
  }
}

</mosaic_0001>

<llo_original>
// kernel: _coupling_call.1
$region0: #{_coupling_call.1}
  #allocation0 [shape = 'u32[]', space=smem, size = 0x4, offset = 0x4, fixed_abs, tag = 'smem constant byte address 0x4 - core index']
  #allocation1 [shape = 'u32[144,128]{1,0:T(1,128)}', space=vmem, size = 0x12000, scoped, tag = 'internal scratch']
  %s0 = inlined_call_operand.hbm [shape: f32[8,32], index: 0, kind: input, shape index: {}]
  %s1 = inlined_call_operand.vmem [shape: bf16[8,8], index: 1, kind: input, shape index: {}]
  %s2 = inlined_call_operand.hbm [shape: bf16[16,64], index: 2, kind: input, shape index: {}]
  %s3 = inlined_call_operand.hbm [shape: bf16[8,64], index: 3, kind: input, shape index: {}]
  %s4 = inlined_call_operand.vmem [shape: f32[1,64], index: 4, kind: input, shape index: {}]
  %s5 = inlined_call_operand.vmem [shape: bf16[64,64], index: 5, kind: input, shape index: {}]
  %s6 = inlined_call_operand.hbm [shape: f32[1,64], index: 6, kind: input, shape index: {}]
  %s7 = inlined_call_operand.vmem [shape: bf16[64,64], index: 7, kind: input, shape index: {}]
  %s8 = inlined_call_operand.hbm [shape: f32[1,64], index: 8, kind: input, shape index: {}]
  %s9 = inlined_call_operand.vmem [shape: bf16[64,32], index: 9, kind: input, shape index: {}]
  %s10 = inlined_call_operand.hbm [shape: f32[1,32], index: 10, kind: input, shape index: {}]
  %s11 = inlined_call_operand.hbm [shape: bf16[16,64], index: 11, kind: input, shape index: {}]
  %s12 = inlined_call_operand.vmem [shape: bf16[8,64], index: 12, kind: input, shape index: {}]
  %s13 = inlined_call_operand.vmem [shape: f32[1,64], index: 13, kind: input, shape index: {}]
  %s14 = inlined_call_operand.vmem [shape: bf16[64,64], index: 14, kind: input, shape index: {}]
  %s15 = inlined_call_operand.vmem [shape: f32[1,64], index: 15, kind: input, shape index: {}]
  %s16 = inlined_call_operand.vmem [shape: bf16[64,64], index: 16, kind: input, shape index: {}]
  %s17 = inlined_call_operand.vmem [shape: f32[1,64], index: 17, kind: input, shape index: {}]
  %s18 = inlined_call_operand.vmem [shape: bf16[64,32], index: 18, kind: input, shape index: {}]
  %s19 = inlined_call_operand.vmem [shape: f32[1,32], index: 19, kind: input, shape index: {}]
  %s20 = inlined_call_operand.hbm [shape: f32[8,32], index: 20, kind: output, shape index: {0}]
  %s21 = inlined_call_operand.vmem [shape: f32[8,1], index: 21, kind: output, shape index: {1}]
  %22 = xla_tuple %s20, %s21
  %s23 = sld [smem:[#allocation0]]
  $region126: #{_coupling_call.1} parent=0
    _
  %s25 = ssub.s32 1, %s23
  %s26 = scalar_select 0, %s25, %s23
  $region1: #{_coupling_call.1} parent=0
    #allocation2 [shape = 'u8[4096]{0}', space=vmem, size = 0x1000, scoped, tag = 'input window, operand 0, single buffered']
    #allocation3 [shape = 's32[1]{0}', space=sflag, size = 0x4, scoped, tag = 'scoped memory for _coupling_call.1']
    #allocation4 [shape = 's32[1]{0}', space=sflag, size = 0x4, scoped, tag = 'scoped memory for _coupling_call.1']
    #allocation5 [shape = 'u8[4096]{0}', space=vmem, size = 0x1000, scoped, tag = 'input window, operand 2, single buffered']
    #allocation6 [shape = 's32[1]{0}', space=sflag, size = 0x4, scoped, tag = 'scoped memory for _coupling_call.1']
    #allocation7 [shape = 'u8[2048]{0}', space=vmem, size = 0x800, scoped, tag = 'input window, operand 3, single buffered']
    #allocation8 [shape = 'u8[512]{0}', space=vmem, size = 0x400, scoped, tag = 'input window, operand 6, single buffered']
    #allocation9 [shape = 's32[1]{0}', space=sflag, size = 0x4, scoped, tag = 'scoped memory for _coupling_call.1']
    #allocation10 [shape = 'u8[512]{0}', space=vmem, size = 0x400, scoped, tag = 'input window, operand 8, single buffered']
    #allocation11 [shape = 'u8[512]{0}', space=vmem, size = 0x400, scoped, tag = 'input window, operand 10, single buffered']
    #allocation12 [shape = 's32[1]{0}', space=sflag, size = 0x4, scoped, tag = 'scoped memory for _coupling_call.1']
    #allocation13 [shape = 'u8[4096]{0}', space=vmem, size = 0x1000, scoped, tag = 'input window, operand 11, single buffered']
    #allocation14 [shape = 'u8[4096]{0}', space=vmem, size = 0x1000, scoped, tag = 'output window, operand 0, single buffered']
    %27 = vsyncpa [#allocation3], 0
    %28 = vsyncpa [#allocation6], 0
    %29 = vsyncpa [#allocation9], 0
    %30 = vsyncpa [#allocation12], 0
    %31 = vsyncpa [#allocation4], 0
    // Predicated region
    $region2: #{_coupling_call.1} parent=1 // pred_check
      _
    $region3: #{_coupling_call.1} parent=1 // pred_check_branch
      %33 = sbr.rel (0) target = $region5
    $region4: #{_coupling_call.1} parent=1 // pred_region
      %s35 = ssub.s32 128, 128
      %36 = vsyncadd [#allocation3], %s35
      %s38 = sshll.u32 [#allocation2], 4
      %s39 = int_to_ptr.vmem [resolvable:$true] %s38
      %41 = dma.hbm_to_vmem [thread:$0]  %s0, 128, %s39, [#allocation3]
    $region5: #{_coupling_call.1} parent=1 // pred_fallthru
      _
    // Predicated region
    $region6: #{_coupling_call.1} parent=1 // pred_check
      _
    $region7: #{_coupling_call.1} parent=1 // pred_check_branch
      %43 = sbr.rel (0) target = $region9
    $region8: #{_coupling_call.1} parent=1 // pred_region
      _
    $region9: #{_coupling_call.1} parent=1 // pred_fallthru
      _
    // Predicated region
    $region10: #{_coupling_call.1} parent=1 // pred_check
      _
    $region11: #{_coupling_call.1} parent=1 // pred_check_branch
      %45 = sbr.rel (0) target = $region13
    $region12: #{_coupling_call.1} parent=1 // pred_region
      %s47 = ssub.s32 128, 128
      %48 = vsyncadd [#allocation6], %s47
      %s49 = sshll.u32 [#allocation5], 4
      %s50 = int_to_ptr.vmem [resolvable:$true] %s49
      %55 = dma.hbm_to_vmem [thread:$0]  %s2, 128, %s50, [#allocation6], 64, 64, 4
    $region13: #{_coupling_call.1} parent=1 // pred_fallthru
      _
    // Predicated region
    $region14: #{_coupling_call.1} parent=1 // pred_check
      _
    $region15: #{_coupling_call.1} parent=1 // pred_check_branch
      %57 = sbr.rel (0) target = $region17
    $region16: #{_coupling_call.1} parent=1 // pred_region
      %s59 = ssub.s32 64, 64
      %60 = vsyncadd [#allocation6], %s59
      %s62 = sshll.u32 [#allocation7], 4
      %s63 = int_to_ptr.vmem [resolvable:$true] %s62
      %65 = dma.hbm_to_vmem [thread:$0]  %s3, 64, %s63, [#allocation6]
    $region17: #{_coupling_call.1} parent=1 // pred_fallthru
      _
    // Predicated region
    $region18: #{_coupling_call.1} parent=1 // pred_check
      _
    $region19: #{_coupling_call.1} parent=1 // pred_check_branch
      %67 = sbr.rel (0) target = $region21
    $region20: #{_coupling_call.1} parent=1 // pred_region
      _
    $region21: #{_coupling_call.1} parent=1 // pred_fallthru
      _
    // Predicated region
    $region22: #{_coupling_call.1} parent=1 // pred_check
      _
    $region23: #{_coupling_call.1} parent=1 // pred_check_branch
      %69 = sbr.rel (0) target = $region25
    $region24: #{_coupling_call.1} parent=1 // pred_region
      _
    $region25: #{_coupling_call.1} parent=1 // pred_fallthru
      _
    // Predicated region
    $region26: #{_coupling_call.1} parent=1 // pred_check
      _
    $region27: #{_coupling_call.1} parent=1 // pred_check_branch
      %71 = sbr.rel (0) target = $region29
    $region28: #{_coupling_call.1} parent=1 // pred_region
      %s73 = ssub.s32 16, 16
      %74 = vsyncadd [#allocation9], %s73
      %s76 = sshll.u32 [#allocation8], 4
      %s77 = int_to_ptr.vmem [resolvable:$true] %s76
      %79 = dma.hbm_to_vmem [thread:$0]  %s6, 16, %s77, [#allocation9]
    $region29: #{_coupling_call.1} parent=1 // pred_fallthru
      _
    // Predicated region
    $region30: #{_coupling_call.1} parent=1 // pred_check
      _
    $region31: #{_coupling_call.1} parent=1 // pred_check_branch
      %81 = sbr.rel (0) target = $region33
    $region32: #{_coupling_call.1} parent=1 // pred_region
      _
    $region33: #{_coupling_call.1} parent=1 // pred_fallthru
      _
    // Predicated region
    $region34: #{_coupling_call.1} parent=1 // pred_check
      _
    $region35: #{_coupling_call.1} parent=1 // pred_check_branch
      %83 = sbr.rel (0) target = $region37
    $region36: #{_coupling_call.1} parent=1 // pred_region
      %s85 = ssub.s32 16, 16
      %86 = vsyncadd [#allocation9], %s85
      %s88 = sshll.u32 [#allocation10], 4
      %s89 = int_to_ptr.vmem [resolvable:$true] %s88
      %91 = dma.hbm_to_vmem [thread:$0]  %s8, 16, %s89, [#allocation9]
    $region37: #{_coupling_call.1} parent=1 // pred_fallthru
      _
    // Predicated region
    $region38: #{_coupling_call.1} parent=1 // pred_check
      _
    $region39: #{_coupling_call.1} parent=1 // pred_check_branch
      %93 = sbr.rel (0) target = $region41
    $region40: #{_coupling_call.1} parent=1 // pred_region
      _
    $region41: #{_coupling_call.1} parent=1 // pred_fallthru
      _
    // Predicated region
    $region42: #{_coupling_call.1} parent=1 // pred_check
      _
    $region43: #{_coupling_call.1} parent=1 // pred_check_branch
      %95 = sbr.rel (0) target = $region45
    $region44: #{_coupling_call.1} parent=1 // pred_region
      %s97 = ssub.s32 16, 16
      %98 = vsyncadd [#allocation12], %s97
      %s100 = sshll.u32 [#allocation11], 4
      %s101 = int_to_ptr.vmem [resolvable:$true] %s100
      %103 = dma.hbm_to_vmem [thread:$0]  %s10, 16, %s101, [#allocation12]
    $region45: #{_coupling_call.1} parent=1 // pred_fallthru
      _
    // Predicated region
    $region46: #{_coupling_call.1} parent=1 // pred_check
      _
    $region47: #{_coupling_call.1} parent=1 // pred_check_branch
      %105 = sbr.rel (0) target = $region49
    $region48: #{_coupling_call.1} parent=1 // pred_region
      %s107 = ssub.s32 128, 128
      %108 = vsyncadd [#allocation12], %s107
      %s109 = sshll.u32 [#allocation13], 4
      %s110 = int_to_ptr.vmem [resolvable:$true] %s109
      %115 = dma.hbm_to_vmem [thread:$0]  %s11, 128, %s110, [#allocation12], 64, 64, 4
    $region49: #{_coupling_call.1} parent=1 // pred_fallthru
      _
    // Predicated region
    $region50: #{_coupling_call.1} parent=1 // pred_check
      _
    $region51: #{_coupling_call.1} parent=1 // pred_check_branch
      %117 = sbr.rel (0) target = $region53
    $region52: #{_coupling_call.1} parent=1 // pred_region
      _
    $region53: #{_coupling_call.1} parent=1 // pred_fallthru
      _
    // Predicated region
    $region54: #{_coupling_call.1} parent=1 // pred_check
      _
    $region55: #{_coupling_call.1} parent=1 // pred_check_branch
      %119 = sbr.rel (0) target = $region57
    $region56: #{_coupling_call.1} parent=1 // pred_region
      _
    $region57: #{_coupling_call.1} parent=1 // pred_fallthru
      _
    // Predicated region
    $region58: #{_coupling_call.1} parent=1 // pred_check
      _
    $region59: #{_coupling_call.1} parent=1 // pred_check_branch
      %121 = sbr.rel (0) target = $region61
    $region60: #{_coupling_call.1} parent=1 // pred_region
      _
    $region61: #{_coupling_call.1} parent=1 // pred_fallthru
      _
    // Predicated region
    $region62: #{_coupling_call.1} parent=1 // pred_check
      _
    $region63: #{_coupling_call.1} parent=1 // pred_check_branch
      %123 = sbr.rel (0) target = $region65
    $region64: #{_coupling_call.1} parent=1 // pred_region
      _
    $region65: #{_coupling_call.1} parent=1 // pred_fallthru
      _
    // Predicated region
    $region66: #{_coupling_call.1} parent=1 // pred_check
      _
    $region67: #{_coupling_call.1} parent=1 // pred_check_branch
      %125 = sbr.rel (0) target = $region69
    $region68: #{_coupling_call.1} parent=1 // pred_region
      _
    $region69: #{_coupling_call.1} parent=1 // pred_fallthru
      _
    // Predicated region
    $region70: #{_coupling_call.1} parent=1 // pred_check
      _
    $region71: #{_coupling_call.1} parent=1 // pred_check_branch
      %127 = sbr.rel (0) target = $region73
    $region72: #{_coupling_call.1} parent=1 // pred_region
      _
    $region73: #{_coupling_call.1} parent=1 // pred_fallthru
      _
    // Predicated region
    $region74: #{_coupling_call.1} parent=1 // pred_check
      _
    $region75: #{_coupling_call.1} parent=1 // pred_check_branch
      %129 = sbr.rel (0) target = $region77
    $region76: #{_coupling_call.1} parent=1 // pred_region
      _
    $region77: #{_coupling_call.1} parent=1 // pred_fallthru
      _
    // Predicated region
    $region78: #{_coupling_call.1} parent=1 // pred_check
      _
    $region79: #{_coupling_call.1} parent=1 // pred_check_branch
      %131 = sbr.rel (0) target = $region81
    $region80: #{_coupling_call.1} parent=1 // pred_region
      _
    $region81: #{_coupling_call.1} parent=1 // pred_fallthru
      _
    // Predicated region
    $region82: #{_coupling_call.1} parent=1 // pred_check
      _
    $region83: #{_coupling_call.1} parent=1 // pred_check_branch
      %133 = sbr.rel (0) target = $region85
    $region84: #{_coupling_call.1} parent=1 // pred_region
      %134 = dma.done [#allocation3], 128
    $region85: #{_coupling_call.1} parent=1 // pred_fallthru
      _
    // Predicated region
    $region86: #{_coupling_call.1} parent=1 // pred_check
      _
    $region87: #{_coupling_call.1} parent=1 // pred_check_branch
      %136 = sbr.rel (0) target = $region89
    $region88: #{_coupling_call.1} parent=1 // pred_region
      %137 = dma.done [#allocation6], 128
    $region89: #{_coupling_call.1} parent=1 // pred_fallthru
      _
    // Predicated region
    $region90: #{_coupling_call.1} parent=1 // pred_check
      _
    $region91: #{_coupling_call.1} parent=1 // pred_check_branch
      %139 = sbr.rel (0) target = $region93
    $region92: #{_coupling_call.1} parent=1 // pred_region
      %140 = dma.done [#allocation6], 64
    $region93: #{_coupling_call.1} parent=1 // pred_fallthru
      _
    // Predicated region
    $region94: #{_coupling_call.1} parent=1 // pred_check
      _
    $region95: #{_coupling_call.1} parent=1 // pred_check_branch
      %142 = sbr.rel (0) target = $region97
    $region96: #{_coupling_call.1} parent=1 // pred_region
      %143 = dma.done [#allocation9], 16
    $region97: #{_coupling_call.1} parent=1 // pred_fallthru
      _
    // Predicated region
    $region98: #{_coupling_call.1} parent=1 // pred_check
      _
    $region99: #{_coupling_call.1} parent=1 // pred_check_branch
      %145 = sbr.rel (0) target = $region101
    $region100: #{_coupling_call.1} parent=1 // pred_region
      %146 = dma.done [#allocation9], 16
    $region101: #{_coupling_call.1} parent=1 // pred_fallthru
      _
    // Predicated region
    $region102: #{_coupling_call.1} parent=1 // pred_check
      _
    $region103: #{_coupling_call.1} parent=1 // pred_check_branch
      %148 = sbr.rel (0) target = $region105
    $region104: #{_coupling_call.1} parent=1 // pred_region
      %149 = dma.done [#allocation12], 16
    $region105: #{_coupling_call.1} parent=1 // pred_fallthru
      _
    // Predicated region
    $region106: #{_coupling_call.1} parent=1 // pred_check
      _
    $region107: #{_coupling_call.1} parent=1 // pred_check_branch
      %151 = sbr.rel (0) target = $region109
    $region108: #{_coupling_call.1} parent=1 // pred_region
      %152 = dma.done [#allocation12], 128
    $region109: #{_coupling_call.1} parent=1 // pred_fallthru
      _
    %v154 = vld [vmem:[#allocation2] sm:$0xff]
    %v155 = vld [vmem:[%s1] sm:$0xf]
    %v156 = vpack.c.bf16 %v154, %v154
    %v157 = vld [vmem:[#allocation5] sm:$0xf]
    %v158 = vld [vmem:[#allocation5 + $0x4] sm:$0xf]
    %v159 = vld [vmem:[#allocation7] sm:$0xf]
    %vm160 = vcmask 64512
    %v162 = vsel %vm160, %v155, 0
    %vm164 = vcmask 1043456
    %v166 = vsel %vm164, %v159, 0
    %168 = vmatprep.subr.bf16.mxu0 0
    %169 = vmatpush1.bf16.msra.mxu0 %v166
    %170 = vmatprep.subr.bf16.mxu0 0
    %171 = vmatpush1.bf16.msra.mxu0 0
    %172 = vmatprep.subr.bf16.mxu0 0
    %173 = vmatpush1.bf16.msra.mxu0 0
    %174 = vmatprep.subr.bf16.mxu0 0
    %175 = vmatpush1.bf16.msra.mxu0 0
    %176 = vmatprep.subr.bf16.mxu0 0
    %177 = vmatpush1.bf16.msra.mxu0 0
    %178 = vmatprep.subr.bf16.mxu0 0
    %179 = vmatpush1.bf16.msra.mxu0 0
    %180 = vmatprep.subr.bf16.mxu0 0
    %181 = vmatpush1.bf16.msra.mxu0 0
    %182 = vmatprep.subr.bf16.mxu0 0
    %183 = vmatpush1.bf16.msra.mxu0 0
    %184 = vmatprep.subr.bf16.mxu0 0
    %185 = vmatpush1.bf16.msra.mxu0 0
    %186 = vmatprep.subr.bf16.mxu0 0
    %187 = vmatpush1.bf16.msra.mxu0 0
    %188 = vmatprep.subr.bf16.mxu0 0
    %189 = vmatpush1.bf16.msra.mxu0 0
    %190 = vmatprep.subr.bf16.mxu0 0
    %191 = vmatpush1.bf16.msra.mxu0 0
    %192 = vmatprep.subr.bf16.mxu0 0
    %193 = vmatpush1.bf16.msra.mxu0 0
    %194 = vmatprep.subr.bf16.mxu0 0
    %195 = vmatpush1.bf16.msra.mxu0 0
    %196 = vmatprep.subr.bf16.mxu0 0
    %197 = vmatpush1.bf16.msra.mxu0 0
    %198 = vmatprep.subr.bf16.mxu0 0
    %199 = vmatpush1.bf16.msra.mxu0 0
    %200 = vmatprep.mubr.bf16.mxu0 0
    %201 = vmatmul.mubr.bf16.gmra.mrb[0].mxu0 %v162
    %v202 = vpop.f32.mrb[0].mxu0
    %v203 = vadd.f32 0.0, %v202
    %v204 = vpop.f32.mrb[0].mxu0
    %v205 = vpop.f32.mrb[0].mxu0
    %v206 = vpop.f32.mrb[0].mxu0
    %207 = vdwg.mxu0
    %v210 = vunpack.c.l.b16 %v157
    %v211 = vunpack.c.l.b16 %v158
    %v212 = vpack.c.b16 %v211, %v210
    %vm214 = vcmask 130048
    %v216 = vsel %vm214, %v156, 0
    %218 = vmatprep.subr.bf16.mxu0 0
    %219 = vmatpush1.bf16.msra.mxu0 %v212
    %220 = vmatprep.subr.bf16.mxu0 0
    %221 = vmatpush1.bf16.msra.mxu0 0
    %222 = vmatprep.subr.bf16.mxu0 0
    %223 = vmatpush1.bf16.msra.mxu0 0
    %224 = vmatprep.subr.bf16.mxu0 0
    %225 = vmatpush1.bf16.msra.mxu0 0
    %226 = vmatprep.subr.bf16.mxu0 0
    %227 = vmatpush1.bf16.msra.mxu0 0
    %228 = vmatprep.subr.bf16.mxu0 0
    %229 = vmatpush1.bf16.msra.mxu0 0
    %230 = vmatprep.subr.bf16.mxu0 0
    %231 = vmatpush1.bf16.msra.mxu0 0
    %232 = vmatprep.subr.bf16.mxu0 0
    %233 = vmatpush1.bf16.msra.mxu0 0
    %234 = vmatprep.subr.bf16.mxu0 0
    %235 = vmatpush1.bf16.msra.mxu0 0
    %236 = vmatprep.subr.bf16.mxu0 0
    %237 = vmatpush1.bf16.msra.mxu0 0
    %238 = vmatprep.subr.bf16.mxu0 0
    %239 = vmatpush1.bf16.msra.mxu0 0
    %240 = vmatprep.subr.bf16.mxu0 0
    %241 = vmatpush1.bf16.msra.mxu0 0
    %242 = vmatprep.subr.bf16.mxu0 0
    %243 = vmatpush1.bf16.msra.mxu0 0
    %244 = vmatprep.subr.bf16.mxu0 0
    %245 = vmatpush1.bf16.msra.mxu0 0
    %246 = vmatprep.subr.bf16.mxu0 0
    %247 = vmatpush1.bf16.msra.mxu0 0
    %248 = vmatprep.subr.bf16.mxu0 0
    %249 = vmatpush1.bf16.msra.mxu0 0
    %250 = vmatprep.mubr.bf16.mxu0 0
    %251 = vmatmul.mubr.bf16.gmra.mrb[0].mxu0 %v216
    %v252 = vpop.f32.mrb[0].mxu0
    %v253 = vadd.f32 %v203, %v252
    %v254 = vpop.f32.mrb[0].mxu0
    %v255 = vpop.f32.mrb[0].mxu0
    %v256 = vpop.f32.mrb[0].mxu0
    %257 = vdwg.mxu0
    %v258 = vld [vmem:[%s4] sm:$0x1]
    %v260 = vlaneseq
    %v261 = vshrl.u32 %v260, 7
    %v262 = vsub.s32 0, %v261
    %v263 = vrot.slane %v258, %v262
    %v265 = vadd.f32 %v253, %v263
    %vm266 = vcmp.ge.f32.partialorder %v265, 0.0
    %v267 = vmul.f32 %v265, 0.01
    %v268 = vsel %vm266, %v265, %v267
    %v269 = vpack.c.bf16 %v268, %v268
    %v270 = vld [vmem:[%s5] sm:$0xf]
    %v271 = vld [vmem:[%s5 + $0x4] sm:$0xf]
    %v272 = vld [vmem:[%s5 + $0x8] sm:$0xf]
    %v273 = vld [vmem:[%s5 + $0xc] sm:$0xf]
    %v274 = vld [vmem:[%s5 + $0x10] sm:$0xf]
    %v275 = vld [vmem:[%s5 + $0x14] sm:$0xf]
    %v276 = vld [vmem:[%s5 + $0x18] sm:$0xf]
    %v277 = vld [vmem:[%s5 + $0x1c] sm:$0xf]
    %v278 = vld [vmem:[#allocation8] sm:$0x1]
    %v280 = vlaneseq
    %v281 = vshrl.u32 %v280, 7
    %v282 = vsub.s32 0, %v281
    %v283 = vrot.slane %v278, %v282
    %v293 = vunpack.c.l.b16 %v270
    %v294 = vunpack.c.l.b16 %v271
    %v295 = vunpack.c.l.b16 %v272
    %v296 = vunpack.c.l.b16 %v273
    %v297 = vunpack.c.l.b16 %v274
    %v298 = vunpack.c.l.b16 %v275
    %v299 = vunpack.c.l.b16 %v276
    %v300 = vunpack.c.l.b16 %v277
    %v301 = vpack.c.b16 %v294, %v293
    %v302 = vpack.c.b16 %v296, %v295
    %v303 = vpack.c.b16 %v298, %v297
    %v304 = vpack.c.b16 %v300, %v299
    %vm309 = vcmask 523264
    %v311 = vsel %vm309, %v269, 0
    %313 = vmatprep.subr.bf16.mxu0 0
    %314 = vmatpush1.bf16.msra.mxu0 %v301
    %315 = vmatprep.subr.bf16.mxu0 0
    %316 = vmatpush1.bf16.msra.mxu0 %v302
    %317 = vmatprep.subr.bf16.mxu0 0
    %318 = vmatpush1.bf16.msra.mxu0 %v303
    %319 = vmatprep.subr.bf16.mxu0 0
    %320 = vmatpush1.bf16.msra.mxu0 %v304
    %321 = vmatprep.subr.bf16.mxu0 0
    %322 = vmatpush1.bf16.msra.mxu0 0
    %323 = vmatprep.subr.bf16.mxu0 0
    %324 = vmatpush1.bf16.msra.mxu0 0
    %325 = vmatprep.subr.bf16.mxu0 0
    %326 = vmatpush1.bf16.msra.mxu0 0
    %327 = vmatprep.subr.bf16.mxu0 0
    %328 = vmatpush1.bf16.msra.mxu0 0
    %329 = vmatprep.subr.bf16.mxu0 0
    %330 = vmatpush1.bf16.msra.mxu0 0
    %331 = vmatprep.subr.bf16.mxu0 0
    %332 = vmatpush1.bf16.msra.mxu0 0
    %333 = vmatprep.subr.bf16.mxu0 0
    %334 = vmatpush1.bf16.msra.mxu0 0
    %335 = vmatprep.subr.bf16.mxu0 0
    %336 = vmatpush1.bf16.msra.mxu0 0
    %337 = vmatprep.subr.bf16.mxu0 0
    %338 = vmatpush1.bf16.msra.mxu0 0
    %339 = vmatprep.subr.bf16.mxu0 0
    %340 = vmatpush1.bf16.msra.mxu0 0
    %341 = vmatprep.subr.bf16.mxu0 0
    %342 = vmatpush1.bf16.msra.mxu0 0
    %343 = vmatprep.subr.bf16.mxu0 0
    %344 = vmatpush1.bf16.msra.mxu0 0
    %345 = vmatprep.mubr.bf16.mxu0 0
    %346 = vmatmul.mubr.bf16.gmra.mrb[0].mxu0 %v311
    %v347 = vpop.f32.mrb[0].mxu0
    %v348 = vadd.f32 %v283, %v347
    %v349 = vpop.f32.mrb[0].mxu0
    %v350 = vpop.f32.mrb[0].mxu0
    %v351 = vpop.f32.mrb[0].mxu0
    %352 = vdwg.mxu0
    %vm353 = vcmp.ge.f32.partialorder %v348, 0.0
    %v354 = vmul.f32 %v348, 0.01
    %v355 = vsel %vm353, %v348, %v354
    %v356 = vpack.c.bf16 %v355, %v355
    %v357 = vld [vmem:[%s7] sm:$0xf]
    %v358 = vld [vmem:[%s7 + $0x4] sm:$0xf]
    %v359 = vld [vmem:[%s7 + $0x8] sm:$0xf]
    %v360 = vld [vmem:[%s7 + $0xc] sm:$0xf]
    %v361 = vld [vmem:[%s7 + $0x10] sm:$0xf]
    %v362 = vld [vmem:[%s7 + $0x14] sm:$0xf]
    %v363 = vld [vmem:[%s7 + $0x18] sm:$0xf]
    %v364 = vld [vmem:[%s7 + $0x1c] sm:$0xf]
    %v365 = vld [vmem:[#allocation10] sm:$0x1]
    %v367 = vlaneseq
    %v368 = vshrl.u32 %v367, 7
    %v369 = vsub.s32 0, %v368
    %v370 = vrot.slane %v365, %v369
    %v380 = vunpack.c.l.b16 %v357
    %v381 = vunpack.c.l.b16 %v358
    %v382 = vunpack.c.l.b16 %v359
    %v383 = vunpack.c.l.b16 %v360
    %v384 = vunpack.c.l.b16 %v361
    %v385 = vunpack.c.l.b16 %v362
    %v386 = vunpack.c.l.b16 %v363
    %v387 = vunpack.c.l.b16 %v364
    %v388 = vpack.c.b16 %v381, %v380
    %v389 = vpack.c.b16 %v383, %v382
    %v390 = vpack.c.b16 %v385, %v384
    %v391 = vpack.c.b16 %v387, %v386
    %v397 = vsel %vm309, %v356, 0
    %399 = vmatprep.subr.bf16.mxu0 0
    %400 = vmatpush1.bf16.msra.mxu0 %v388
    %401 = vmatprep.subr.bf16.mxu0 0
    %402 = vmatpush1.bf16.msra.mxu0 %v389
    %403 = vmatprep.subr.bf16.mxu0 0
    %404 = vmatpush1.bf16.msra.mxu0 %v390
    %405 = vmatprep.subr.bf16.mxu0 0
    %406 = vmatpush1.bf16.msra.mxu0 %v391
    %407 = vmatprep.subr.bf16.mxu0 0
    %408 = vmatpush1.bf16.msra.mxu0 0
    %409 = vmatprep.subr.bf16.mxu0 0
    %410 = vmatpush1.bf16.msra.mxu0 0
    %411 = vmatprep.subr.bf16.mxu0 0
    %412 = vmatpush1.bf16.msra.mxu0 0
    %413 = vmatprep.subr.bf16.mxu0 0
    %414 = vmatpush1.bf16.msra.mxu0 0
    %415 = vmatprep.subr.bf16.mxu0 0
    %416 = vmatpush1.bf16.msra.mxu0 0
    %417 = vmatprep.subr.bf16.mxu0 0
    %418 = vmatpush1.bf16.msra.mxu0 0
    %419 = vmatprep.subr.bf16.mxu0 0
    %420 = vmatpush1.bf16.msra.mxu0 0
    %421 = vmatprep.subr.bf16.mxu0 0
    %422 = vmatpush1.bf16.msra.mxu0 0
    %423 = vmatprep.subr.bf16.mxu0 0
    %424 = vmatpush1.bf16.msra.mxu0 0
    %425 = vmatprep.subr.bf16.mxu0 0
    %426 = vmatpush1.bf16.msra.mxu0 0
    %427 = vmatprep.subr.bf16.mxu0 0
    %428 = vmatpush1.bf16.msra.mxu0 0
    %429 = vmatprep.subr.bf16.mxu0 0
    %430 = vmatpush1.bf16.msra.mxu0 0
    %431 = vmatprep.mubr.bf16.mxu0 0
    %432 = vmatmul.mubr.bf16.gmra.mrb[0].mxu0 %v397
    %v433 = vpop.f32.mrb[0].mxu0
    %v434 = vadd.f32 %v370, %v433
    %v435 = vpop.f32.mrb[0].mxu0
    %v436 = vpop.f32.mrb[0].mxu0
    %v437 = vpop.f32.mrb[0].mxu0
    %438 = vdwg.mxu0
    %vm439 = vcmp.ge.f32.partialorder %v434, 0.0
    %v440 = vmul.f32 %v434, 0.01
    %v441 = vsel %vm439, %v434, %v440
    %v442 = vpack.c.bf16 %v441, %v441
    %v443 = vld [vmem:[%s9] sm:$0xf]
    %v444 = vld [vmem:[%s9 + $0x4] sm:$0xf]
    %v445 = vld [vmem:[%s9 + $0x8] sm:$0xf]
    %v446 = vld [vmem:[%s9 + $0xc] sm:$0xf]
    %v447 = vld [vmem:[%s9 + $0x10] sm:$0xf]
    %v448 = vld [vmem:[%s9 + $0x14] sm:$0xf]
    %v449 = vld [vmem:[%s9 + $0x18] sm:$0xf]
    %v450 = vld [vmem:[%s9 + $0x1c] sm:$0xf]
    %v451 = vld [vmem:[#allocation11] sm:$0x1]
    %v453 = vlaneseq
    %v454 = vshrl.u32 %v453, 7
    %v455 = vsub.s32 0, %v454
    %v456 = vrot.slane %v451, %v455
    %v466 = vunpack.c.l.b16 %v443
    %v467 = vunpack.c.l.b16 %v444
    %v468 = vunpack.c.l.b16 %v445
    %v469 = vunpack.c.l.b16 %v446
    %v470 = vunpack.c.l.b16 %v447
    %v471 = vunpack.c.l.b16 %v448
    %v472 = vunpack.c.l.b16 %v449
    %v473 = vunpack.c.l.b16 %v450
    %v474 = vpack.c.b16 %v467, %v466
    %v475 = vpack.c.b16 %v469, %v468
    %v476 = vpack.c.b16 %v471, %v470
    %v477 = vpack.c.b16 %v473, %v472
    %v483 = vsel %vm309, %v442, 0
    %485 = vmatprep.subr.bf16.mxu0 0
    %486 = vmatpush1.bf16.msra.mxu0 %v474
    %487 = vmatprep.subr.bf16.mxu0 0
    %488 = vmatpush1.bf16.msra.mxu0 %v475
    %489 = vmatprep.subr.bf16.mxu0 0
    %490 = vmatpush1.bf16.msra.mxu0 %v476
    %491 = vmatprep.subr.bf16.mxu0 0
    %492 = vmatpush1.bf16.msra.mxu0 %v477
    %493 = vmatprep.subr.bf16.mxu0 0
    %494 = vmatpush1.bf16.msra.mxu0 0
    %495 = vmatprep.subr.bf16.mxu0 0
    %496 = vmatpush1.bf16.msra.mxu0 0
    %497 = vmatprep.subr.bf16.mxu0 0
    %498 = vmatpush1.bf16.msra.mxu0 0
    %499 = vmatprep.subr.bf16.mxu0 0
    %500 = vmatpush1.bf16.msra.mxu0 0
    %501 = vmatprep.subr.bf16.mxu0 0
    %502 = vmatpush1.bf16.msra.mxu0 0
    %503 = vmatprep.subr.bf16.mxu0 0
    %504 = vmatpush1.bf16.msra.mxu0 0
    %505 = vmatprep.subr.bf16.mxu0 0
    %506 = vmatpush1.bf16.msra.mxu0 0
    %507 = vmatprep.subr.bf16.mxu0 0
    %508 = vmatpush1.bf16.msra.mxu0 0
    %509 = vmatprep.subr.bf16.mxu0 0
    %510 = vmatpush1.bf16.msra.mxu0 0
    %511 = vmatprep.subr.bf16.mxu0 0
    %512 = vmatpush1.bf16.msra.mxu0 0
    %513 = vmatprep.subr.bf16.mxu0 0
    %514 = vmatpush1.bf16.msra.mxu0 0
    %515 = vmatprep.subr.bf16.mxu0 0
    %516 = vmatpush1.bf16.msra.mxu0 0
    %517 = vmatprep.mubr.bf16.mxu0 0
    %518 = vmatmul.mubr.bf16.gmra.mrb[0].mxu0 %v483
    %v519 = vpop.f32.mrb[0].mxu0
    %v520 = vadd.f32 %v456, %v519
    %v521 = vpop.f32.mrb[0].mxu0
    %v522 = vpop.f32.mrb[0].mxu0
    %v523 = vpop.f32.mrb[0].mxu0
    %524 = vdwg.mxu0
    %v525 = vtanh.pop %v520
    %v526 = vmul.f32 %v525, 1.442695
    %v527 = vpow.pop %v526
    %529 = vrot.lane.b32.xlu0 %v527, 16
    %v530 = vpop.permute.xlu0 %529
    %v532 = vmul.f32 %v154, %v530
    %v533 = vadd.f32 %v532, %v520
    %v534 = vsel %vm214, %v525, 0.0
    %535 = vadd.xlane.f32.xlu0 %v534
    %v536 = vpop.xlane.xlu0 %535
    %v537 = vpack.c.bf16 %v533, %v533
    %v538 = vld [vmem:[#allocation13] sm:$0xf]
    %v539 = vld [vmem:[#allocation13 + $0x4] sm:$0xf]
    %v540 = vld [vmem:[%s12] sm:$0xf]
    %v542 = vsel %vm164, %v540, 0
    %544 = vmatprep.subr.bf16.mxu0 0
    %545 = vmatpush1.bf16.msra.mxu0 %v542
    %546 = vmatprep.subr.bf16.mxu0 0
    %547 = vmatpush1.bf16.msra.mxu0 0
    %548 = vmatprep.subr.bf16.mxu0 0
    %549 = vmatpush1.bf16.msra.mxu0 0
    %550 = vmatprep.subr.bf16.mxu0 0
    %551 = vmatpush1.bf16.msra.mxu0 0
    %552 = vmatprep.subr.bf16.mxu0 0
    %553 = vmatpush1.bf16.msra.mxu0 0
    %554 = vmatprep.subr.bf16.mxu0 0
    %555 = vmatpush1.bf16.msra.mxu0 0
    %556 = vmatprep.subr.bf16.mxu0 0
    %557 = vmatpush1.bf16.msra.mxu0 0
    %558 = vmatprep.subr.bf16.mxu0 0
    %559 = vmatpush1.bf16.msra.mxu0 0
    %560 = vmatprep.subr.bf16.mxu0 0
    %561 = vmatpush1.bf16.msra.mxu0 0
    %562 = vmatprep.subr.bf16.mxu0 0
    %563 = vmatpush1.bf16.msra.mxu0 0
    %564 = vmatprep.subr.bf16.mxu0 0
    %565 = vmatpush1.bf16.msra.mxu0 0
    %566 = vmatprep.subr.bf16.mxu0 0
    %567 = vmatpush1.bf16.msra.mxu0 0
    %568 = vmatprep.subr.bf16.mxu0 0
    %569 = vmatpush1.bf16.msra.mxu0 0
    %570 = vmatprep.subr.bf16.mxu0 0
    %571 = vmatpush1.bf16.msra.mxu0 0
    %572 = vmatprep.subr.bf16.mxu0 0
    %573 = vmatpush1.bf16.msra.mxu0 0
    %574 = vmatprep.subr.bf16.mxu0 0
    %575 = vmatpush1.bf16.msra.mxu0 0
    %576 = vmatprep.mubr.bf16.mxu0 0
    %577 = vmatmul.mubr.bf16.gmra.mrb[0].mxu0 %v162
    %v578 = vpop.f32.mrb[0].mxu0
    %v579 = vadd.f32 0.0, %v578
    %v580 = vpop.f32.mrb[0].mxu0
    %v581 = vpop.f32.mrb[0].mxu0
    %v582 = vpop.f32.mrb[0].mxu0
    %583 = vdwg.mxu0
    %585 = vrot.lane.b32.xlu0 %v537, 112
    %v586 = vpop.permute.xlu0 %585
    %v589 = vunpack.c.l.b16 %v538
    %v590 = vunpack.c.l.b16 %v539
    %v591 = vpack.c.b16 %v590, %v589
    %v594 = vsel %vm214, %v586, 0
    %596 = vmatprep.subr.bf16.mxu0 0
    %597 = vmatpush1.bf16.msra.mxu0 %v591
    %598 = vmatprep.subr.bf16.mxu0 0
    %599 = vmatpush1.bf16.msra.mxu0 0
    %600 = vmatprep.subr.bf16.mxu0 0
    %601 = vmatpush1.bf16.msra.mxu0 0
    %602 = vmatprep.subr.bf16.mxu0 0
    %603 = vmatpush1.bf16.msra.mxu0 0
    %604 = vmatprep.subr.bf16.mxu0 0
    %605 = vmatpush1.bf16.msra.mxu0 0
    %606 = vmatprep.subr.bf16.mxu0 0
    %607 = vmatpush1.bf16.msra.mxu0 0
    %608 = vmatprep.subr.bf16.mxu0 0
    %609 = vmatpush1.bf16.msra.mxu0 0
    %610 = vmatprep.subr.bf16.mxu0 0
    %611 = vmatpush1.bf16.msra.mxu0 0
    %612 = vmatprep.subr.bf16.mxu0 0
    %613 = vmatpush1.bf16.msra.mxu0 0
    %614 = vmatprep.subr.bf16.mxu0 0
    %615 = vmatpush1.bf16.msra.mxu0 0
    %616 = vmatprep.subr.bf16.mxu0 0
    %617 = vmatpush1.bf16.msra.mxu0 0
    %618 = vmatprep.subr.bf16.mxu0 0
    %619 = vmatpush1.bf16.msra.mxu0 0
    %620 = vmatprep.subr.bf16.mxu0 0
    %621 = vmatpush1.bf16.msra.mxu0 0
    %622 = vmatprep.subr.bf16.mxu0 0
    %623 = vmatpush1.bf16.msra.mxu0 0
    %624 = vmatprep.subr.bf16.mxu0 0
    %625 = vmatpush1.bf16.msra.mxu0 0
    %626 = vmatprep.subr.bf16.mxu0 0
    %627 = vmatpush1.bf16.msra.mxu0 0
    %628 = vmatprep.mubr.bf16.mxu0 0
    %629 = vmatmul.mubr.bf16.gmra.mrb[0].mxu0 %v594
    %v630 = vpop.f32.mrb[0].mxu0
    %v631 = vadd.f32 %v579, %v630
    %v632 = vpop.f32.mrb[0].mxu0
    %v633 = vpop.f32.mrb[0].mxu0
    %v634 = vpop.f32.mrb[0].mxu0
    %635 = vdwg.mxu0
    %v636 = vld [vmem:[%s13] sm:$0x1]
    %v638 = vlaneseq
    %v639 = vshrl.u32 %v638, 7
    %v640 = vsub.s32 0, %v639
    %v641 = vrot.slane %v636, %v640
    %v643 = vadd.f32 %v631, %v641
    %vm644 = vcmp.ge.f32.partialorder %v643, 0.0
    %v645 = vmul.f32 %v643, 0.01
    %v646 = vsel %vm644, %v643, %v645
    %v647 = vpack.c.bf16 %v646, %v646
    %v648 = vld [vmem:[%s14] sm:$0xf]
    %v649 = vld [vmem:[%s14 + $0x4] sm:$0xf]
    %v650 = vld [vmem:[%s14 + $0x8] sm:$0xf]
    %v651 = vld [vmem:[%s14 + $0xc] sm:$0xf]
    %v652 = vld [vmem:[%s14 + $0x10] sm:$0xf]
    %v653 = vld [vmem:[%s14 + $0x14] sm:$0xf]
    %v654 = vld [vmem:[%s14 + $0x18] sm:$0xf]
    %v655 = vld [vmem:[%s14 + $0x1c] sm:$0xf]
    %v656 = vld [vmem:[%s15] sm:$0x1]
    %v658 = vlaneseq
    %v659 = vshrl.u32 %v658, 7
    %v660 = vsub.s32 0, %v659
    %v661 = vrot.slane %v656, %v660
    %v671 = vunpack.c.l.b16 %v648
    %v672 = vunpack.c.l.b16 %v649
    %v673 = vunpack.c.l.b16 %v650
    %v674 = vunpack.c.l.b16 %v651
    %v675 = vunpack.c.l.b16 %v652
    %v676 = vunpack.c.l.b16 %v653
    %v677 = vunpack.c.l.b16 %v654
    %v678 = vunpack.c.l.b16 %v655
    %v679 = vpack.c.b16 %v672, %v671
    %v680 = vpack.c.b16 %v674, %v673
    %v681 = vpack.c.b16 %v676, %v675
    %v682 = vpack.c.b16 %v678, %v677
    %v688 = vsel %vm309, %v647, 0
    %690 = vmatprep.subr.bf16.mxu0 0
    %691 = vmatpush1.bf16.msra.mxu0 %v679
    %692 = vmatprep.subr.bf16.mxu0 0
    %693 = vmatpush1.bf16.msra.mxu0 %v680
    %694 = vmatprep.subr.bf16.mxu0 0
    %695 = vmatpush1.bf16.msra.mxu0 %v681
    %696 = vmatprep.subr.bf16.mxu0 0
    %697 = vmatpush1.bf16.msra.mxu0 %v682
    %698 = vmatprep.subr.bf16.mxu0 0
    %699 = vmatpush1.bf16.msra.mxu0 0
    %700 = vmatprep.subr.bf16.mxu0 0
    %701 = vmatpush1.bf16.msra.mxu0 0
    %702 = vmatprep.subr.bf16.mxu0 0
    %703 = vmatpush1.bf16.msra.mxu0 0
    %704 = vmatprep.subr.bf16.mxu0 0
    %705 = vmatpush1.bf16.msra.mxu0 0
    %706 = vmatprep.subr.bf16.mxu0 0
    %707 = vmatpush1.bf16.msra.mxu0 0
    %708 = vmatprep.subr.bf16.mxu0 0
    %709 = vmatpush1.bf16.msra.mxu0 0
    %710 = vmatprep.subr.bf16.mxu0 0
    %711 = vmatpush1.bf16.msra.mxu0 0
    %712 = vmatprep.subr.bf16.mxu0 0
    %713 = vmatpush1.bf16.msra.mxu0 0
    %714 = vmatprep.subr.bf16.mxu0 0
    %715 = vmatpush1.bf16.msra.mxu0 0
    %716 = vmatprep.subr.bf16.mxu0 0
    %717 = vmatpush1.bf16.msra.mxu0 0
    %718 = vmatprep.subr.bf16.mxu0 0
    %719 = vmatpush1.bf16.msra.mxu0 0
    %720 = vmatprep.subr.bf16.mxu0 0
    %721 = vmatpush1.bf16.msra.mxu0 0
    %722 = vmatprep.mubr.bf16.mxu0 0
    %723 = vmatmul.mubr.bf16.gmra.mrb[0].mxu0 %v688
    %v724 = vpop.f32.mrb[0].mxu0
    %v725 = vadd.f32 %v661, %v724
    %v726 = vpop.f32.mrb[0].mxu0
    %v727 = vpop.f32.mrb[0].mxu0
    %v728 = vpop.f32.mrb[0].mxu0
    %729 = vdwg.mxu0
    %vm730 = vcmp.ge.f32.partialorder %v725, 0.0
    %v731 = vmul.f32 %v725, 0.01
    %v732 = vsel %vm730, %v725, %v731
    %v733 = vpack.c.bf16 %v732, %v732
    %v734 = vld [vmem:[%s16] sm:$0xf]
    %v735 = vld [vmem:[%s16 + $0x4] sm:$0xf]
    %v736 = vld [vmem:[%s16 + $0x8] sm:$0xf]
    %v737 = vld [vmem:[%s16 + $0xc] sm:$0xf]
    %v738 = vld [vmem:[%s16 + $0x10] sm:$0xf]
    %v739 = vld [vmem:[%s16 + $0x14] sm:$0xf]
    %v740 = vld [vmem:[%s16 + $0x18] sm:$0xf]
    %v741 = vld [vmem:[%s16 + $0x1c] sm:$0xf]
    %v742 = vld [vmem:[%s17] sm:$0x1]
    %v744 = vlaneseq
    %v745 = vshrl.u32 %v744, 7
    %v746 = vsub.s32 0, %v745
    %v747 = vrot.slane %v742, %v746
    %v757 = vunpack.c.l.b16 %v734
    %v758 = vunpack.c.l.b16 %v735
    %v759 = vunpack.c.l.b16 %v736
    %v760 = vunpack.c.l.b16 %v737
    %v761 = vunpack.c.l.b16 %v738
    %v762 = vunpack.c.l.b16 %v739
    %v763 = vunpack.c.l.b16 %v740
    %v764 = vunpack.c.l.b16 %v741
    %v765 = vpack.c.b16 %v758, %v757
    %v766 = vpack.c.b16 %v760, %v759
    %v767 = vpack.c.b16 %v762, %v761
    %v768 = vpack.c.b16 %v764, %v763
    %v774 = vsel %vm309, %v733, 0
    %776 = vmatprep.subr.bf16.mxu0 0
    %777 = vmatpush1.bf16.msra.mxu0 %v765
    %778 = vmatprep.subr.bf16.mxu0 0
    %779 = vmatpush1.bf16.msra.mxu0 %v766
    %780 = vmatprep.subr.bf16.mxu0 0
    %781 = vmatpush1.bf16.msra.mxu0 %v767
    %782 = vmatprep.subr.bf16.mxu0 0
    %783 = vmatpush1.bf16.msra.mxu0 %v768
    %784 = vmatprep.subr.bf16.mxu0 0
    %785 = vmatpush1.bf16.msra.mxu0 0
    %786 = vmatprep.subr.bf16.mxu0 0
    %787 = vmatpush1.bf16.msra.mxu0 0
    %788 = vmatprep.subr.bf16.mxu0 0
    %789 = vmatpush1.bf16.msra.mxu0 0
    %790 = vmatprep.subr.bf16.mxu0 0
    %791 = vmatpush1.bf16.msra.mxu0 0
    %792 = vmatprep.subr.bf16.mxu0 0
    %793 = vmatpush1.bf16.msra.mxu0 0
    %794 = vmatprep.subr.bf16.mxu0 0
    %795 = vmatpush1.bf16.msra.mxu0 0
    %796 = vmatprep.subr.bf16.mxu0 0
    %797 = vmatpush1.bf16.msra.mxu0 0
    %798 = vmatprep.subr.bf16.mxu0 0
    %799 = vmatpush1.bf16.msra.mxu0 0
    %800 = vmatprep.subr.bf16.mxu0 0
    %801 = vmatpush1.bf16.msra.mxu0 0
    %802 = vmatprep.subr.bf16.mxu0 0
    %803 = vmatpush1.bf16.msra.mxu0 0
    %804 = vmatprep.subr.bf16.mxu0 0
    %805 = vmatpush1.bf16.msra.mxu0 0
    %806 = vmatprep.subr.bf16.mxu0 0
    %807 = vmatpush1.bf16.msra.mxu0 0
    %808 = vmatprep.mubr.bf16.mxu0 0
    %809 = vmatmul.mubr.bf16.gmra.mrb[0].mxu0 %v774
    %v810 = vpop.f32.mrb[0].mxu0
    %v811 = vadd.f32 %v747, %v810
    %v812 = vpop.f32.mrb[0].mxu0
    %v813 = vpop.f32.mrb[0].mxu0
    %v814 = vpop.f32.mrb[0].mxu0
    %815 = vdwg.mxu0
    %vm816 = vcmp.ge.f32.partialorder %v811, 0.0
    %v817 = vmul.f32 %v811, 0.01
    %v818 = vsel %vm816, %v811, %v817
    %v819 = vpack.c.bf16 %v818, %v818
    %v820 = vld [vmem:[%s18] sm:$0xf]
    %v821 = vld [vmem:[%s18 + $0x4] sm:$0xf]
    %v822 = vld [vmem:[%s18 + $0x8] sm:$0xf]
    %v823 = vld [vmem:[%s18 + $0xc] sm:$0xf]
    %v824 = vld [vmem:[%s18 + $0x10] sm:$0xf]
    %v825 = vld [vmem:[%s18 + $0x14] sm:$0xf]
    %v826 = vld [vmem:[%s18 + $0x18] sm:$0xf]
    %v827 = vld [vmem:[%s18 + $0x1c] sm:$0xf]
    %v828 = vld [vmem:[%s19] sm:$0x1]
    %v830 = vlaneseq
    %v831 = vshrl.u32 %v830, 7
    %v832 = vsub.s32 0, %v831
    %v833 = vrot.slane %v828, %v832
    %v843 = vunpack.c.l.b16 %v820
    %v844 = vunpack.c.l.b16 %v821
    %v845 = vunpack.c.l.b16 %v822
    %v846 = vunpack.c.l.b16 %v823
    %v847 = vunpack.c.l.b16 %v824
    %v848 = vunpack.c.l.b16 %v825
    %v849 = vunpack.c.l.b16 %v826
    %v850 = vunpack.c.l.b16 %v827
    %v851 = vpack.c.b16 %v844, %v843
    %v852 = vpack.c.b16 %v846, %v845
    %v853 = vpack.c.b16 %v848, %v847
    %v854 = vpack.c.b16 %v850, %v849
    %v860 = vsel %vm309, %v819, 0
    %862 = vmatprep.subr.bf16.mxu0 0
    %863 = vmatpush1.bf16.msra.mxu0 %v851
    %864 = vmatprep.subr.bf16.mxu0 0
    %865 = vmatpush1.bf16.msra.mxu0 %v852
    %866 = vmatprep.subr.bf16.mxu0 0
    %867 = vmatpush1.bf16.msra.mxu0 %v853
    %868 = vmatprep.subr.bf16.mxu0 0
    %869 = vmatpush1.bf16.msra.mxu0 %v854
    %870 = vmatprep.subr.bf16.mxu0 0
    %871 = vmatpush1.bf16.msra.mxu0 0
    %872 = vmatprep.subr.bf16.mxu0 0
    %873 = vmatpush1.bf16.msra.mxu0 0
    %874 = vmatprep.subr.bf16.mxu0 0
    %875 = vmatpush1.bf16.msra.mxu0 0
    %876 = vmatprep.subr.bf16.mxu0 0
    %877 = vmatpush1.bf16.msra.mxu0 0
    %878 = vmatprep.subr.bf16.mxu0 0
    %879 = vmatpush1.bf16.msra.mxu0 0
    %880 = vmatprep.subr.bf16.mxu0 0
    %881 = vmatpush1.bf16.msra.mxu0 0
    %882 = vmatprep.subr.bf16.mxu0 0
    %883 = vmatpush1.bf16.msra.mxu0 0
    %884 = vmatprep.subr.bf16.mxu0 0
    %885 = vmatpush1.bf16.msra.mxu0 0
    %886 = vmatprep.subr.bf16.mxu0 0
    %887 = vmatpush1.bf16.msra.mxu0 0
    %888 = vmatprep.subr.bf16.mxu0 0
    %889 = vmatpush1.bf16.msra.mxu0 0
    %890 = vmatprep.subr.bf16.mxu0 0
    %891 = vmatpush1.bf16.msra.mxu0 0
    %892 = vmatprep.subr.bf16.mxu0 0
    %893 = vmatpush1.bf16.msra.mxu0 0
    %894 = vmatprep.mubr.bf16.mxu0 0
    %895 = vmatmul.mubr.bf16.gmra.mrb[0].mxu0 %v860
    %v896 = vpop.f32.mrb[0].mxu0
    %v897 = vadd.f32 %v833, %v896
    %v898 = vpop.f32.mrb[0].mxu0
    %v899 = vpop.f32.mrb[0].mxu0
    %v900 = vpop.f32.mrb[0].mxu0
    %901 = vdwg.mxu0
    %v902 = vtanh.pop %v897
    %v903 = vmul.f32 %v902, 1.442695
    %v904 = vpow.pop %v903
    %v905 = vmul.f32 %v154, %v904
    %907 = vrot.lane.b32.xlu0 %v897, 112
    %v908 = vpop.permute.xlu0 %907
    %v910 = vadd.f32 %v905, %v908
    %v911 = vsel %vm214, %v902, 0.0
    %912 = vadd.xlane.f32.xlu0 %v911
    %v913 = vpop.xlane.xlu0 %912
    %v914 = vadd.f32 %v536, %v913
    %916 = vrot.lane.b32.xlu0 %v533, 112
    %v917 = vpop.permute.xlu0 %916
    %920 = vrot.lane.b32.xlu0 %v910, 16
    %v921 = vpop.permute.xlu0 %920
    %v923 = vsel %vm214, %v917, %v921
    %vm924 = vcmask 261120
    %925 = vst.msk [vmem:[#allocation14] sm:$0xff] %vm924, %v923
    %vm926 = vcmask 7168
    %927 = vst.msk [vmem:[%s21] sm:$0xff] %vm926, %v914
    // Predicated region
    $region110: #{_coupling_call.1} parent=1 // pred_check
      _
    $region111: #{_coupling_call.1} parent=1 // pred_check_branch
      %929 = sbr.rel (0) target = $region113
    $region112: #{_coupling_call.1} parent=1 // pred_region
      %s931 = ssub.s32 128, 128
      %932 = vsyncadd [#allocation4], %s931
      %s934 = sshll.u32 [#allocation14], 4
      %s935 = int_to_ptr.vmem [resolvable:$true] %s934
      %937 = dma.vmem_to_hbm [thread:$0]  %s935, 128, %s20, [#allocation4]
    $region113: #{_coupling_call.1} parent=1 // pred_fallthru
      _
    // Predicated region
    $region114: #{_coupling_call.1} parent=1 // pred_check
      _
    $region115: #{_coupling_call.1} parent=1 // pred_check_branch
      %939 = sbr.rel (0) target = $region117
    $region116: #{_coupling_call.1} parent=1 // pred_region
      _
    $region117: #{_coupling_call.1} parent=1 // pred_fallthru
      _
    // Predicated region
    $region118: #{_coupling_call.1} parent=1 // pred_check
      _
    $region119: #{_coupling_call.1} parent=1 // pred_check_branch
      %941 = sbr.rel (0) target = $region121
    $region120: #{_coupling_call.1} parent=1 // pred_region
      %942 = dma.done [#allocation4], 128
    $region121: #{_coupling_call.1} parent=1 // pred_fallthru
      _
    // Predicated region
    $region122: #{_coupling_call.1} parent=1 // pred_check
      _
    $region123: #{_coupling_call.1} parent=1 // pred_check_branch
      %944 = sbr.rel (0) target = $region125
    $region124: #{_coupling_call.1} parent=1 // pred_region
      _
    $region125: #{_coupling_call.1} parent=1 // pred_fallthru
      _
    %945 = vsyncpa [#allocation3], 1
    %946 = vsyncpa [#allocation6], 1
    %947 = vsyncpa [#allocation9], 1
    %948 = vsyncpa [#allocation12], 1
    %949 = vsyncpa [#allocation4], 1

</llo_original>
